<compile_context>
chip_gen: v5e
topology: v5e:2x2
jax: 0.10.0
libtpu: 0.0.40
codegen_flags: <defaults>
</compile_context>

<pallas_src>
import math
from functools import partial

import jax
import jax.numpy as jnp
import numpy as np
from jax.experimental import pallas as pl
from jax.experimental.pallas import tpu as pltpu

NHEAD = 2
LN_EPS = 1e-5
_KEY_PAD_NEG = -1e9      # key-padding bias (matches the reference additive mask)
_CROSS_BATCH_NEG = -2e9  # strictly more negative: cross-batch keys always lose


def _layernorm(z, gamma, beta):
    mu = jnp.mean(z, axis=-1, keepdims=True)
    var = jnp.mean((z - mu) ** 2, axis=-1, keepdims=True)
    return (z - mu) * jax.lax.rsqrt(var + LN_EPS) * gamma + beta


def _pick_tile(n):
    """Largest row tile (multiple of 8) dividing n that leaves >= 2 grid steps."""
    for t in (512, 256, 128, 64, 32, 16, 8):
        if n % t == 0 and 2 * t <= n:
            return t
    return n


def _vmem_limit_bytes(n, d, h, tq, cdt_bytes):
    """Rough per-step VMEM footprint for the attention/FFN kernel (+headroom)."""
    weights = (2 * d * d + 2 * d * h) * cdt_bytes + 4 * (2 * d + h + 4 * d)
    resident = 2 * n * d * cdt_bytes + 3 * n * 4          # K, V, mask vectors
    tiles = 2 * 2 * tq * d * 4                             # x in + out, double-buffered
    scratch = 3 * tq * n * 4 + tq * h * 4 + 6 * tq * d * 4  # scores/p, FFN hidden, temps
    est = weights + resident + tiles + scratch
    # Never below the 32 MiB default scoped limit; big-N cases should be
    # flash-tiled instead of pushing past v7x's 64 MiB physical VMEM.
    return int(min(max(2 * est, 32 * 2 ** 20), 96 * 2 ** 20))


# ---------------------------------------------------------------------------
# Kernel A: K / V projection over row tiles (parallel, pipelined).
# ---------------------------------------------------------------------------
def kv_proj_kernel(x_ref, wk_ref, bk_ref, wv_ref, bv_ref, k_ref, v_ref):
    x = x_ref[...].astype(wk_ref.dtype)
    k_ref[...] = (jnp.dot(x, wk_ref[...], preferred_element_type=jnp.float32)
                  + bk_ref[...]).astype(k_ref.dtype)
    v_ref[...] = (jnp.dot(x, wv_ref[...], preferred_element_type=jnp.float32)
                  + bv_ref[...]).astype(v_ref.dtype)


# ---------------------------------------------------------------------------
# Kernel B: per-query-tile Q proj + attention + out-proj + LN1 + FFN + LN2.
# ---------------------------------------------------------------------------
def attn_ffn_kernel(x_ref, qb_ref, kb_ref, kbias_ref, k_ref, v_ref,
                    wq_ref, bq_ref, wo_ref, bo_ref,
                    w1_ref, b1_ref, w2_ref, b2_ref,
                    g1_ref, be1_ref, g2_ref, be2_ref,
                    out_ref, *, nhead):
    x = x_ref[...]                                  # (TQ, D) f32 residual/LN path
    tq, d = x.shape
    hd = d // nhead
    cdt = wq_ref.dtype
    use_bf16 = jnp.dtype(cdt) == jnp.dtype(jnp.bfloat16)

    # Q projection for this tile (query scale pre-folded into wq/bq).
    q = (jnp.dot(x.astype(cdt), wq_ref[...], preferred_element_type=jnp.float32)
         + bq_ref[...]).astype(cdt)                 # (TQ, D)
    k = k_ref[...]                                  # (N, D) resident across steps
    v = v_ref[...]                                  # (N, D)

    # Additive mask rebuilt in-kernel from length-N vectors (no (N,N) HBM slab):
    #   same-batch & unpadded -> 0, same-batch & padded -> -1e9,
    #   cross-batch           -> -2e9 (strictly lower, so a fully padded batch
    #   degenerates to uniform attention over its own keys only).
    same_batch = qb_ref[...] == kb_ref[...]         # (TQ,1)==(1,N) -> (TQ,N)
    bias = jnp.where(same_batch, kbias_ref[...], jnp.float32(_CROSS_BATCH_NEG))

    wo = wo_ref[...]
    acc = jnp.zeros((tq, d), jnp.float32)
    for h in range(nhead):                          # tiny static loop
        sl = slice(h * hd, (h + 1) * hd)
        # QK^T without an explicit transpose: contract the last dims.
        s = jax.lax.dot_general(
            q[:, sl], k[:, sl],
            dimension_numbers=(((1,), (1,)), ((), ())),
            preferred_element_type=jnp.float32)     # (TQ, N)
        s = s + bias
        m = jnp.max(s, axis=-1, keepdims=True)
        if use_bf16:
            p = jnp.exp((s - m).astype(jnp.bfloat16))          # bf16 EUP exp
            l = jnp.sum(p.astype(jnp.float32), axis=-1, keepdims=True)
            inv = pl.reciprocal(l, approx=True)
        else:
            p = jnp.exp(s - m)
            l = jnp.sum(p, axis=-1, keepdims=True)
            inv = pl.reciprocal(l, approx=False)
        head = jnp.dot(p.astype(cdt), v[:, sl],
                       preferred_element_type=jnp.float32)     # (TQ, hd) unnormalized
        head = head * inv                                       # normalize hd cols, not N
        # Accumulate straight into the out-projection (no lane-dim concat).
        acc = acc + jnp.dot(head.astype(cdt), wo[sl, :],
                            preferred_element_type=jnp.float32)

    attn = acc + bo_ref[...]

    # residual + LayerNorm 1 (f32)
    h1 = _layernorm(attn + x, g1_ref[...], be1_ref[...])

    # FFN: Linear -> ReLU -> Linear (dropouts = identity)
    f = jnp.dot(h1.astype(cdt), w1_ref[...],
                preferred_element_type=jnp.float32) + b1_ref[...]
    f = jnp.maximum(f, 0.0)
    f = jnp.dot(f.astype(cdt), w2_ref[...],
                preferred_element_type=jnp.float32) + b2_ref[...]

    # residual + LayerNorm 2 (f32)
    out_ref[...] = _layernorm(h1 + f, g2_ref[...], be2_ref[...])


# ---------------------------------------------------------------------------
# Wrapper
# ---------------------------------------------------------------------------
def prepare_params(params, *, compute_dtype=jnp.float32):
    """One-time weight prep (hoisted out of the per-call path): fold the
    1/sqrt(head_dim) query scale, cast matmul operands to compute dtype."""
    d_model = params["wq_t"].shape[0]
    scale = 1.0 / math.sqrt(d_model // NHEAD)
    cdt, f32 = compute_dtype, jnp.float32
    return {
        "wq": (params["wq_t"] * scale).astype(cdt),
        "bq": (params["bq"] * scale).astype(f32),
        "wk": params["wk_t"].astype(cdt), "bk": params["bk"].astype(f32),
        "wv": params["wv_t"].astype(cdt), "bv": params["bv"].astype(f32),
        "wo": params["wo_t"].astype(cdt), "bo": params["bo"].astype(f32),
        "w1": params["w1_t"].astype(cdt), "b1": params["b1"].astype(f32),
        "w2": params["w2_t"].astype(cdt), "b2": params["b2"].astype(f32),
        "g1": params["g1"].astype(f32), "be1": params["be1"].astype(f32),
        "g2": params["g2"].astype(f32), "be2": params["be2"].astype(f32),
    }


@jax.jit
def self_attn_forward(x, x_mask, prep):
    """x: (B, S, D) f32.  x_mask: (B, S) bool (True = masked/padded key)."""
    B, S, D = x.shape
    N = B * S
    H = prep["w1"].shape[1]
    cdt = prep["wq"].dtype
    cbytes = jnp.dtype(cdt).itemsize

    xf = x.reshape(N, D).astype(jnp.float32)
    batch_id = jnp.repeat(jnp.arange(B, dtype=jnp.int32), S)
    qb = batch_id.reshape(N, 1)                     # query batch ids
    kb = batch_id.reshape(1, N)                     # key batch ids
    kbias = jnp.where(x_mask.reshape(1, N),
                      jnp.float32(_KEY_PAD_NEG), jnp.float32(0.0))

    TQ = _pick_tile(N)
    grid = (N // TQ,)
    rows = lambda i: (i, 0)
    const = lambda i: (0, 0)

    # ---- Kernel A: K / V projection for the whole flattened sequence ----
    k, v = pl.pallas_call(
        kv_proj_kernel,
        out_shape=(jax.ShapeDtypeStruct((N, D), cdt),
                   jax.ShapeDtypeStruct((N, D), cdt)),
        grid_spec=pltpu.PrefetchScalarGridSpec(
            num_scalar_prefetch=0,
            grid=grid,
            in_specs=[pl.BlockSpec((TQ, D), rows),
                      pl.BlockSpec((D, D), const),
                      pl.BlockSpec((1, D), const),
                      pl.BlockSpec((D, D), const),
                      pl.BlockSpec((1, D), const)],
            out_specs=[pl.BlockSpec((TQ, D), rows),
                       pl.BlockSpec((TQ, D), rows)]),
        compiler_params=pltpu.CompilerParams(
            dimension_semantics=("parallel",)),
    )(xf, prep["wk"], prep["bk"], prep["wv"], prep["bv"])

    # ---- Kernel B: attention + out-proj + LN1 + FFN + LN2, query-tiled ----
    out = pl.pallas_call(
        partial(attn_ffn_kernel, nhead=NHEAD),
        out_shape=jax.ShapeDtypeStruct((N, D), jnp.float32),
        grid_spec=pltpu.PrefetchScalarGridSpec(
            num_scalar_prefetch=0,
            grid=grid,
            in_specs=[pl.BlockSpec((TQ, D), rows),   # x tile (Q proj + residual)
                      pl.BlockSpec((TQ, 1), rows),   # query batch ids
                      pl.BlockSpec((1, N), const),   # key batch ids
                      pl.BlockSpec((1, N), const),   # key-pad bias
                      pl.BlockSpec((N, D), const),   # K (resident)
                      pl.BlockSpec((N, D), const),   # V (resident)
                      pl.BlockSpec((D, D), const),   # wq (scale folded)
                      pl.BlockSpec((1, D), const),   # bq (scale folded)
                      pl.BlockSpec((D, D), const),   # wo
                      pl.BlockSpec((1, D), const),   # bo
                      pl.BlockSpec((D, H), const),   # w1
                      pl.BlockSpec((1, H), const),   # b1
                      pl.BlockSpec((H, D), const),   # w2
                      pl.BlockSpec((1, D), const),   # b2
                      pl.BlockSpec((1, D), const),   # g1
                      pl.BlockSpec((1, D), const),   # be1
                      pl.BlockSpec((1, D), const),   # g2
                      pl.BlockSpec((1, D), const)],  # be2
            out_specs=pl.BlockSpec((TQ, D), rows)),
        compiler_params=pltpu.CompilerParams(
            dimension_semantics=("parallel",),
            vmem_limit_bytes=_vmem_limit_bytes(N, D, H, TQ, cbytes)),
    )(xf, qb, kb, kbias, k, v,
      prep["wq"], prep["bq"], prep["wo"], prep["bo"],
      prep["w1"], prep["b1"], prep["w2"], prep["b2"],
      prep["g1"], prep["be1"], prep["g2"], prep["be2"])
    return out.reshape(B, S, D)


# ---------------------------------------------------------------------------
# Params / reference
# ---------------------------------------------------------------------------
def init_params(key, d_model, nhead, hidden_dim):
    ks = jax.random.split(key, 12)
    sc_in = 1.0 / math.sqrt(d_model)
    sc_h = 1.0 / math.sqrt(hidden_dim)
    # PyTorch Linear stores (out, in); we store pre-transposed (in, out).
    return {
        "wq_t": jax.random.normal(ks[0], (d_model, d_model), jnp.float32) * sc_in,
        "wk_t": jax.random.normal(ks[1], (d_model, d_model), jnp.float32) * sc_in,
        "wv_t": jax.random.normal(ks[2], (d_model, d_model), jnp.float32) * sc_in,
        "bq": jax.random.normal(ks[3], (1, d_model), jnp.float32) * 0.02,
        "bk": jax.random.normal(ks[4], (1, d_model), jnp.float32) * 0.02,
        "bv": jax.random.normal(ks[5], (1, d_model), jnp.float32) * 0.02,
        "wo_t": jax.random.normal(ks[6], (d_model, d_model), jnp.float32) * sc_in,
        "bo": jax.random.normal(ks[7], (1, d_model), jnp.float32) * 0.02,
        "w1_t": jax.random.normal(ks[8], (d_model, hidden_dim), jnp.float32) * sc_in,
        "b1": jax.random.normal(ks[9], (1, hidden_dim), jnp.float32) * 0.02,
        "w2_t": jax.random.normal(ks[10], (hidden_dim, d_model), jnp.float32) * sc_h,
        "b2": jax.random.normal(ks[11], (1, d_model), jnp.float32) * 0.02,
        "g1": jnp.ones((1, d_model), jnp.float32) * 1.05,
        "be1": jnp.full((1, d_model), 0.01, jnp.float32),
        "g2": jnp.ones((1, d_model), jnp.float32) * 0.95,
        "be2": jnp.full((1, d_model), -0.01, jnp.float32),
    }


def ref_forward(x, x_mask, p, nhead):
    """Pure-JAX reference replicating PyTorch SelfAttn (eval-mode dropout)."""
    B, S, D = x.shape
    hd = D // nhead
    mask_add = jnp.where(x_mask, -1e9, 0.0).astype(jnp.float32)  # (B, S)

    q = x @ p["wq_t"] + p["bq"][0]
    k = x @ p["wk_t"] + p["bk"][0]
    v = x @ p["wv_t"] + p["bv"][0]
    qh = q.reshape(B, S, nhead, hd).transpose(0, 2, 1, 3) / math.sqrt(hd)
    kh = k.reshape(B, S, nhead, hd).transpose(0, 2, 1, 3)
    vh = v.reshape(B, S, nhead, hd).transpose(0, 2, 1, 3)
    s = jnp.einsum("bhqd,bhkd->bhqk", qh, kh) + mask_add[:, None, None, :]
    w = jax.nn.softmax(s, axis=-1)
    o = jnp.einsum("bhqk,bhkd->bhqd", w, vh).transpose(0, 2, 1, 3).reshape(B, S, D)
    o = o @ p["wo_t"] + p["bo"][0]

    def ln(z, g, b):
        mu = jnp.mean(z, axis=-1, keepdims=True)
        var = jnp.mean((z - mu) ** 2, axis=-1, keepdims=True)
        return (z - mu) * jax.lax.rsqrt(var + LN_EPS) * g + b

    h1 = ln(o + x, p["g1"][0], p["be1"][0])
    f = jnp.maximum(h1 @ p["w1_t"] + p["b1"][0], 0.0) @ p["w2_t"] + p["b2"][0]
    return ln(h1 + f, p["g2"][0], p["be2"][0])


if __name__ == "__main__":
    B, S, D, H = 2, 8, 32, 64
    key = jax.random.PRNGKey(0)
    kx, kp = jax.random.split(key)

    x = jax.random.normal(kx, (B, S, D), jnp.float32)
    lengths = jnp.array([S, S - 2], dtype=jnp.int32)
    x_mask = jnp.arange(S)[None, :] >= lengths[:, None]   # (B, S) bool, True=pad

    params = init_params(kp, D, NHEAD, H)
    ref = ref_forward(x, x_mask, params, NHEAD)

    # f32 compute path: matches the PyTorch module's numerics tightly.
    prep32 = prepare_params(params, compute_dtype=jnp.float32)
    out = jax.block_until_ready(self_attn_forward(x, x_mask, prep32))
    np.testing.assert_allclose(np.asarray(out), np.asarray(ref),
                               rtol=1e-4, atol=1e-4)

    # bf16 matmul-operand / bf16-exp path (MXU/EUP-native on v6e/v7x);
    # mask, softmax sum, residuals and LayerNorms stay f32.
    prep16 = prepare_params(params, compute_dtype=jnp.bfloat16)
    out_bf16 = jax.block_until_ready(self_attn_forward(x, x_mask, prep16))
    np.testing.assert_allclose(np.asarray(out_bf16), np.asarray(ref),
                               rtol=2e-1, atol=2e-1)

    print("KERNEL_OK")
</pallas_src>

<mosaic_0001>
module attributes {stable_mosaic.version = 11 : i64} {
  func.func @kv_proj_kernel(%arg0: i32, %arg1: memref<8x32xf32, #tpu.memory_space<vmem>>, %arg2: memref<32x32xf32, #tpu.memory_space<vmem>>, %arg3: memref<1x32xf32, #tpu.memory_space<vmem>>, %arg4: memref<32x32xf32, #tpu.memory_space<vmem>>, %arg5: memref<1x32xf32, #tpu.memory_space<vmem>>, %arg6: memref<8x32xf32, #tpu.memory_space<vmem>>, %arg7: memref<8x32xf32, #tpu.memory_space<vmem>>) attributes {dimension_semantics = [#tpu.dimension_semantics<parallel>], iteration_bounds = array<i64: 2>, scalar_prefetch = 0 : i64, scratch_operands = 0 : i64, tpu.core_type = #tpu.core_type<tc>, window_params = [{transform_indices = @transform_0, window_bounds = array<i64: 8, 32>}, {pipeline_mode = #tpu.pipeline_mode<synchronous>, transform_indices = @transform_1, window_bounds = array<i64: 32, 32>}, {pipeline_mode = #tpu.pipeline_mode<synchronous>, transform_indices = @transform_2, window_bounds = array<i64: 1, 32>}, {pipeline_mode = #tpu.pipeline_mode<synchronous>, transform_indices = @transform_3, window_bounds = array<i64: 32, 32>}, {pipeline_mode = #tpu.pipeline_mode<synchronous>, transform_indices = @transform_4, window_bounds = array<i64: 1, 32>}, {transform_indices = @transform_5, window_bounds = array<i64: 8, 32>}, {transform_indices = @transform_6, window_bounds = array<i64: 8, 32>}]} {
    %c0 = arith.constant 0 : index
    %c0_0 = arith.constant 0 : index
    %0 = vector.load %arg1[%c0, %c0_0] : memref<8x32xf32, #tpu.memory_space<vmem>>, vector<8x32xf32>
    %c0_1 = arith.constant 0 : index
    %c0_2 = arith.constant 0 : index
    %1 = vector.load %arg2[%c0_1, %c0_2] : memref<32x32xf32, #tpu.memory_space<vmem>>, vector<32x32xf32>
    %cst = arith.constant dense<0.000000e+00> : vector<8x32xf32>
    %2 = tpu.matmul %0, %1, %cst {dimension_numbers = #tpu.dot_dimension_numbers<[1], [0], [0], [1], [0, 0, 1, 1], [], []>} : vector<8x32xf32>, vector<32x32xf32>, vector<8x32xf32> -> vector<8x32xf32>
    %c0_3 = arith.constant 0 : index
    %c0_4 = arith.constant 0 : index
    %3 = vector.load %arg3[%c0_3, %c0_4] : memref<1x32xf32, #tpu.memory_space<vmem>>, vector<1x32xf32>
    %4 = vector.broadcast %3 : vector<1x32xf32> to vector<8x32xf32>
    %5 = arith.addf %2, %4 : vector<8x32xf32>
    %c0_5 = arith.constant 0 : index
    %c0_6 = arith.constant 0 : index
    %6 = vector.load %arg6[%c0_5, %c0_6] : memref<8x32xf32, #tpu.memory_space<vmem>>, vector<8x32xf32>
    tpu.vector_store %arg6[%c0_5, %c0_6], %5 {strides = array<i32>} : memref<8x32xf32, #tpu.memory_space<vmem>>, vector<8x32xf32>,
    %c0_7 = arith.constant 0 : index
    %c0_8 = arith.constant 0 : index
    %7 = vector.load %arg4[%c0_7, %c0_8] : memref<32x32xf32, #tpu.memory_space<vmem>>, vector<32x32xf32>
    %cst_9 = arith.constant dense<0.000000e+00> : vector<8x32xf32>
    %8 = tpu.matmul %0, %7, %cst_9 {dimension_numbers = #tpu.dot_dimension_numbers<[1], [0], [0], [1], [0, 0, 1, 1], [], []>} : vector<8x32xf32>, vector<32x32xf32>, vector<8x32xf32> -> vector<8x32xf32>
    %c0_10 = arith.constant 0 : index
    %c0_11 = arith.constant 0 : index
    %9 = vector.load %arg5[%c0_10, %c0_11] : memref<1x32xf32, #tpu.memory_space<vmem>>, vector<1x32xf32>
    %10 = vector.broadcast %9 : vector<1x32xf32> to vector<8x32xf32>
    %11 = arith.addf %8, %10 : vector<8x32xf32>
    %c0_12 = arith.constant 0 : index
    %c0_13 = arith.constant 0 : index
    %12 = vector.load %arg7[%c0_12, %c0_13] : memref<8x32xf32, #tpu.memory_space<vmem>>, vector<8x32xf32>
    tpu.vector_store %arg7[%c0_12, %c0_13], %11 {strides = array<i32>} : memref<8x32xf32, #tpu.memory_space<vmem>>, vector<8x32xf32>,
    return
  }
  func.func @transform_0(%arg0: i32) -> (i32, i32) {
    %c0_i32 = arith.constant 0 : i32
    %c0_i32_0 = arith.constant 0 : i32
    return %arg0, %c0_i32 : i32, i32
  }
  func.func @transform_1(%arg0: i32) -> (i32, i32) {
    %c0_i32 = arith.constant 0 : i32
    %c0_i32_0 = arith.constant 0 : i32
    %c0_i32_1 = arith.constant 0 : i32
    return %c0_i32, %c0_i32_0 : i32, i32
  }
  func.func @transform_2(%arg0: i32) -> (i32, i32) {
    %c0_i32 = arith.constant 0 : i32
    %c0_i32_0 = arith.constant 0 : i32
    %c0_i32_1 = arith.constant 0 : i32
    return %c0_i32, %c0_i32_0 : i32, i32
  }
  func.func @transform_3(%arg0: i32) -> (i32, i32) {
    %c0_i32 = arith.constant 0 : i32
    %c0_i32_0 = arith.constant 0 : i32
    %c0_i32_1 = arith.constant 0 : i32
    return %c0_i32, %c0_i32_0 : i32, i32
  }
  func.func @transform_4(%arg0: i32) -> (i32, i32) {
    %c0_i32 = arith.constant 0 : i32
    %c0_i32_0 = arith.constant 0 : i32
    %c0_i32_1 = arith.constant 0 : i32
    return %c0_i32, %c0_i32_0 : i32, i32
  }
  func.func @transform_5(%arg0: i32) -> (i32, i32) {
    %c0_i32 = arith.constant 0 : i32
    %c0_i32_0 = arith.constant 0 : i32
    return %arg0, %c0_i32 : i32, i32
  }
  func.func @transform_6(%arg0: i32) -> (i32, i32) {
    %c0_i32 = arith.constant 0 : i32
    %c0_i32_0 = arith.constant 0 : i32
    return %arg0, %c0_i32 : i32, i32
  }
}

module attributes {stable_mosaic.version = 11 : i64} {
  func.func @attn_ffn_kernel(%arg0: i32, %arg1: memref<8x32xf32, #tpu.memory_space<vmem>>, %arg2: memref<8x1xi32, #tpu.memory_space<vmem>>, %arg3: memref<1x16xi32, #tpu.memory_space<vmem>>, %arg4: memref<1x16xf32, #tpu.memory_space<vmem>>, %arg5: memref<16x32xf32, #tpu.memory_space<vmem>>, %arg6: memref<16x32xf32, #tpu.memory_space<vmem>>, %arg7: memref<32x32xf32, #tpu.memory_space<vmem>>, %arg8: memref<1x32xf32, #tpu.memory_space<vmem>>, %arg9: memref<32x32xf32, #tpu.memory_space<vmem>>, %arg10: memref<1x32xf32, #tpu.memory_space<vmem>>, %arg11: memref<32x64xf32, #tpu.memory_space<vmem>>, %arg12: memref<1x64xf32, #tpu.memory_space<vmem>>, %arg13: memref<64x32xf32, #tpu.memory_space<vmem>>, %arg14: memref<1x32xf32, #tpu.memory_space<vmem>>, %arg15: memref<1x32xf32, #tpu.memory_space<vmem>>, %arg16: memref<1x32xf32, #tpu.memory_space<vmem>>, %arg17: memref<1x32xf32, #tpu.memory_space<vmem>>, %arg18: memref<1x32xf32, #tpu.memory_space<vmem>>, %arg19: memref<8x32xf32, #tpu.memory_space<vmem>>) attributes {dimension_semantics = [#tpu.dimension_semantics<parallel>], iteration_bounds = array<i64: 2>, scalar_prefetch = 0 : i64, scratch_operands = 0 : i64, tpu.core_type = #tpu.core_type<tc>, window_params = [{transform_indices = @transform_0, window_bounds = array<i64: 8, 32>}, {transform_indices = @transform_1, window_bounds = array<i64: 8, 1>}, {pipeline_mode = #tpu.pipeline_mode<synchronous>, transform_indices = @transform_2, window_bounds = array<i64: 1, 16>}, {pipeline_mode = #tpu.pipeline_mode<synchronous>, transform_indices = @transform_3, window_bounds = array<i64: 1, 16>}, {pipeline_mode = #tpu.pipeline_mode<synchronous>, transform_indices = @transform_4, window_bounds = array<i64: 16, 32>}, {pipeline_mode = #tpu.pipeline_mode<synchronous>, transform_indices = @transform_5, window_bounds = array<i64: 16, 32>}, {pipeline_mode = #tpu.pipeline_mode<synchronous>, transform_indices = @transform_6, window_bounds = array<i64: 32, 32>}, {pipeline_mode = #tpu.pipeline_mode<synchronous>, transform_indices = @transform_7, window_bounds = array<i64: 1, 32>}, {pipeline_mode = #tpu.pipeline_mode<synchronous>, transform_indices = @transform_8, window_bounds = array<i64: 32, 32>}, {pipeline_mode = #tpu.pipeline_mode<synchronous>, transform_indices = @transform_9, window_bounds = array<i64: 1, 32>}, {pipeline_mode = #tpu.pipeline_mode<synchronous>, transform_indices = @transform_10, window_bounds = array<i64: 32, 64>}, {pipeline_mode = #tpu.pipeline_mode<synchronous>, transform_indices = @transform_11, window_bounds = array<i64: 1, 64>}, {pipeline_mode = #tpu.pipeline_mode<synchronous>, transform_indices = @transform_12, window_bounds = array<i64: 64, 32>}, {pipeline_mode = #tpu.pipeline_mode<synchronous>, transform_indices = @transform_13, window_bounds = array<i64: 1, 32>}, {pipeline_mode = #tpu.pipeline_mode<synchronous>, transform_indices = @transform_14, window_bounds = array<i64: 1, 32>}, {pipeline_mode = #tpu.pipeline_mode<synchronous>, transform_indices = @transform_15, window_bounds = array<i64: 1, 32>}, {pipeline_mode = #tpu.pipeline_mode<synchronous>, transform_indices = @transform_16, window_bounds = array<i64: 1, 32>}, {pipeline_mode = #tpu.pipeline_mode<synchronous>, transform_indices = @transform_17, window_bounds = array<i64: 1, 32>}, {transform_indices = @transform_18, window_bounds = array<i64: 8, 32>}]} {
    %c0 = arith.constant 0 : index
    %c0_0 = arith.constant 0 : index
    %0 = vector.load %arg1[%c0, %c0_0] : memref<8x32xf32, #tpu.memory_space<vmem>>, vector<8x32xf32>
    %c0_1 = arith.constant 0 : index
    %c0_2 = arith.constant 0 : index
    %1 = vector.load %arg7[%c0_1, %c0_2] : memref<32x32xf32, #tpu.memory_space<vmem>>, vector<32x32xf32>
    %cst = arith.constant dense<0.000000e+00> : vector<8x32xf32>
    %2 = tpu.matmul %0, %1, %cst {dimension_numbers = #tpu.dot_dimension_numbers<[1], [0], [0], [1], [0, 0, 1, 1], [], []>} : vector<8x32xf32>, vector<32x32xf32>, vector<8x32xf32> -> vector<8x32xf32>
    %c0_3 = arith.constant 0 : index
    %c0_4 = arith.constant 0 : index
    %3 = vector.load %arg8[%c0_3, %c0_4] : memref<1x32xf32, #tpu.memory_space<vmem>>, vector<1x32xf32>
    %4 = vector.broadcast %3 : vector<1x32xf32> to vector<8x32xf32>
    %5 = arith.addf %2, %4 : vector<8x32xf32>
    %c0_5 = arith.constant 0 : index
    %c0_6 = arith.constant 0 : index
    %6 = vector.load %arg5[%c0_5, %c0_6] : memref<16x32xf32, #tpu.memory_space<vmem>>, vector<16x32xf32>
    %c0_7 = arith.constant 0 : index
    %c0_8 = arith.constant 0 : index
    %7 = vector.load %arg6[%c0_7, %c0_8] : memref<16x32xf32, #tpu.memory_space<vmem>>, vector<16x32xf32>
    %c0_9 = arith.constant 0 : index
    %c0_10 = arith.constant 0 : index
    %8 = vector.load %arg2[%c0_9, %c0_10] : memref<8x1xi32, #tpu.memory_space<vmem>>, vector<8x1xi32>
    %c0_11 = arith.constant 0 : index
    %c0_12 = arith.constant 0 : index
    %9 = vector.load %arg3[%c0_11, %c0_12] : memref<1x16xi32, #tpu.memory_space<vmem>>, vector<1x16xi32>
    %10 = vector.broadcast %8 : vector<8x1xi32> to vector<8x16xi32>
    %11 = vector.broadcast %9 : vector<1x16xi32> to vector<8x16xi32>
    %12 = arith.cmpi eq, %10, %11 : vector<8x16xi32>
    %c0_13 = arith.constant 0 : index
    %c0_14 = arith.constant 0 : index
    %13 = vector.load %arg4[%c0_13, %c0_14] : memref<1x16xf32, #tpu.memory_space<vmem>>, vector<1x16xf32>
    %cst_15 = arith.constant -2.000000e+09 : f32
    %14 = vector.shape_cast %13 : vector<1x16xf32> to vector<1x16xf32>
    %15 = vector.broadcast %14 : vector<1x16xf32> to vector<8x16xf32>
    %16 = vector.broadcast %cst_15 : f32 to vector<8x16xf32>
    %17 = arith.select %12, %15, %16 : vector<8x16xi1>, vector<8x16xf32>
    %c0_16 = arith.constant 0 : index
    %c0_17 = arith.constant 0 : index
    %18 = vector.load %arg9[%c0_16, %c0_17] : memref<32x32xf32, #tpu.memory_space<vmem>>, vector<32x32xf32>
    %cst_18 = arith.constant 0.000000e+00 : f32
    %19 = vector.broadcast %cst_18 : f32 to vector<8x32xf32>
    %20 = vector.extract_strided_slice %5 {offsets = [0, 0], sizes = [8, 16], strides = [1, 1]} : vector<8x32xf32> to vector<8x16xf32>
    %21 = vector.extract_strided_slice %6 {offsets = [0, 0], sizes = [16, 16], strides = [1, 1]} : vector<16x32xf32> to vector<16x16xf32>
    %cst_19 = arith.constant dense<0.000000e+00> : vector<8x16xf32>
    %22 = tpu.matmul %20, %21, %cst_19 {dimension_numbers = #tpu.dot_dimension_numbers<[1], [1], [0], [0], [0, 0, 1, 0], [], []>} : vector<8x16xf32>, vector<16x16xf32>, vector<8x16xf32> -> vector<8x16xf32>
    %23 = arith.addf %22, %17 : vector<8x16xf32>
    %cst_20 = arith.constant dense<0xFF800000> : vector<8xf32>
    %24 = vector.multi_reduction <maximumf>, %23, %cst_20 [1] : vector<8x16xf32> to vector<8xf32>
    %25 = vector.shape_cast %24 : vector<8xf32> to vector<8x1xf32>
    %26 = vector.broadcast %25 : vector<8x1xf32> to vector<8x16xf32>
    %27 = arith.subf %23, %26 : vector<8x16xf32>
    %28 = math.exp %27 : vector<8x16xf32>
    %cst_21 = arith.constant dense<0.000000e+00> : vector<8xf32>
    %29 = vector.multi_reduction <add>, %28, %cst_21 [1] : vector<8x16xf32> to vector<8xf32>
    %30 = vector.shape_cast %29 : vector<8xf32> to vector<8x1xf32>
    %31 = tpu.reciprocal %30 : vector<8x1xf32> -> vector<8x1xf32>
    %32 = vector.extract_strided_slice %7 {offsets = [0, 0], sizes = [16, 16], strides = [1, 1]} : vector<16x32xf32> to vector<16x16xf32>
    %cst_22 = arith.constant dense<0.000000e+00> : vector<8x16xf32>
    %33 = tpu.matmul %28, %32, %cst_22 {dimension_numbers = #tpu.dot_dimension_numbers<[1], [0], [0], [1], [0, 0, 1, 1], [], []>} : vector<8x16xf32>, vector<16x16xf32>, vector<8x16xf32> -> vector<8x16xf32>
    %34 = vector.broadcast %31 : vector<8x1xf32> to vector<8x16xf32>
    %35 = arith.mulf %33, %34 : vector<8x16xf32>
    %36 = vector.extract_strided_slice %18 {offsets = [0, 0], sizes = [16, 32], strides = [1, 1]} : vector<32x32xf32> to vector<16x32xf32>
    %cst_23 = arith.constant dense<0.000000e+00> : vector<8x32xf32>
    %37 = tpu.matmul %35, %36, %cst_23 {dimension_numbers = #tpu.dot_dimension_numbers<[1], [0], [0], [1], [0, 0, 1, 1], [], []>} : vector<8x16xf32>, vector<16x32xf32>, vector<8x32xf32> -> vector<8x32xf32>
    %38 = arith.addf %19, %37 : vector<8x32xf32>
    %39 = vector.extract_strided_slice %5 {offsets = [0, 16], sizes = [8, 16], strides = [1, 1]} : vector<8x32xf32> to vector<8x16xf32>
    %40 = vector.extract_strided_slice %6 {offsets = [0, 16], sizes = [16, 16], strides = [1, 1]} : vector<16x32xf32> to vector<16x16xf32>
    %cst_24 = arith.constant dense<0.000000e+00> : vector<8x16xf32>
    %41 = tpu.matmul %39, %40, %cst_24 {dimension_numbers = #tpu.dot_dimension_numbers<[1], [1], [0], [0], [0, 0, 1, 0], [], []>} : vector<8x16xf32>, vector<16x16xf32>, vector<8x16xf32> -> vector<8x16xf32>
    %42 = arith.addf %41, %17 : vector<8x16xf32>
    %cst_25 = arith.constant dense<0xFF800000> : vector<8xf32>
    %43 = vector.multi_reduction <maximumf>, %42, %cst_25 [1] : vector<8x16xf32> to vector<8xf32>
    %44 = vector.shape_cast %43 : vector<8xf32> to vector<8x1xf32>
    %45 = vector.broadcast %44 : vector<8x1xf32> to vector<8x16xf32>
    %46 = arith.subf %42, %45 : vector<8x16xf32>
    %47 = math.exp %46 : vector<8x16xf32>
    %cst_26 = arith.constant dense<0.000000e+00> : vector<8xf32>
    %48 = vector.multi_reduction <add>, %47, %cst_26 [1] : vector<8x16xf32> to vector<8xf32>
    %49 = vector.shape_cast %48 : vector<8xf32> to vector<8x1xf32>
    %50 = tpu.reciprocal %49 : vector<8x1xf32> -> vector<8x1xf32>
    %51 = vector.extract_strided_slice %7 {offsets = [0, 16], sizes = [16, 16], strides = [1, 1]} : vector<16x32xf32> to vector<16x16xf32>
    %cst_27 = arith.constant dense<0.000000e+00> : vector<8x16xf32>
    %52 = tpu.matmul %47, %51, %cst_27 {dimension_numbers = #tpu.dot_dimension_numbers<[1], [0], [0], [1], [0, 0, 1, 1], [], []>} : vector<8x16xf32>, vector<16x16xf32>, vector<8x16xf32> -> vector<8x16xf32>
    %53 = vector.broadcast %50 : vector<8x1xf32> to vector<8x16xf32>
    %54 = arith.mulf %52, %53 : vector<8x16xf32>
    %55 = vector.extract_strided_slice %18 {offsets = [16, 0], sizes = [16, 32], strides = [1, 1]} : vector<32x32xf32> to vector<16x32xf32>
    %cst_28 = arith.constant dense<0.000000e+00> : vector<8x32xf32>
    %56 = tpu.matmul %54, %55, %cst_28 {dimension_numbers = #tpu.dot_dimension_numbers<[1], [0], [0], [1], [0, 0, 1, 1], [], []>} : vector<8x16xf32>, vector<16x32xf32>, vector<8x32xf32> -> vector<8x32xf32>
    %57 = arith.addf %38, %56 : vector<8x32xf32>
    %c0_29 = arith.constant 0 : index
    %c0_30 = arith.constant 0 : index
    %58 = vector.load %arg10[%c0_29, %c0_30] : memref<1x32xf32, #tpu.memory_space<vmem>>, vector<1x32xf32>
    %59 = vector.broadcast %58 : vector<1x32xf32> to vector<8x32xf32>
    %60 = arith.addf %57, %59 : vector<8x32xf32>
    %61 = arith.addf %60, %0 : vector<8x32xf32>
    %c0_31 = arith.constant 0 : index
    %c0_32 = arith.constant 0 : index
    %62 = vector.load %arg15[%c0_31, %c0_32] : memref<1x32xf32, #tpu.memory_space<vmem>>, vector<1x32xf32>
    %c0_33 = arith.constant 0 : index
    %c0_34 = arith.constant 0 : index
    %63 = vector.load %arg16[%c0_33, %c0_34] : memref<1x32xf32, #tpu.memory_space<vmem>>, vector<1x32xf32>
    %cst_35 = arith.constant dense<0.000000e+00> : vector<8xf32>
    %64 = vector.multi_reduction <add>, %61, %cst_35 [1] : vector<8x32xf32> to vector<8xf32>
    %65 = vector.shape_cast %64 : vector<8xf32> to vector<8x1xf32>
    %cst_36 = arith.constant 3.200000e+01 : f32
    %66 = vector.broadcast %cst_36 : f32 to vector<8x1xf32>
    %67 = arith.divf %65, %66 : vector<8x1xf32>
    %68 = vector.broadcast %67 : vector<8x1xf32> to vector<8x32xf32>
    %69 = arith.subf %61, %68 : vector<8x32xf32>
    %70 = arith.mulf %69, %69 : vector<8x32xf32>
    %cst_37 = arith.constant dense<0.000000e+00> : vector<8xf32>
    %71 = vector.multi_reduction <add>, %70, %cst_37 [1] : vector<8x32xf32> to vector<8xf32>
    %72 = vector.shape_cast %71 : vector<8xf32> to vector<8x1xf32>
    %cst_38 = arith.constant 3.200000e+01 : f32
    %73 = vector.broadcast %cst_38 : f32 to vector<8x1xf32>
    %74 = arith.divf %72, %73 : vector<8x1xf32>
    %75 = vector.broadcast %67 : vector<8x1xf32> to vector<8x32xf32>
    %76 = arith.subf %61, %75 : vector<8x32xf32>
    %cst_39 = arith.constant 9.99999974E-6 : f32
    %77 = vector.broadcast %cst_39 : f32 to vector<8x1xf32>
    %78 = arith.addf %74, %77 : vector<8x1xf32>
    %79 = math.rsqrt %78 : vector<8x1xf32>
    %80 = vector.broadcast %79 : vector<8x1xf32> to vector<8x32xf32>
    %81 = arith.mulf %76, %80 : vector<8x32xf32>
    %82 = vector.broadcast %62 : vector<1x32xf32> to vector<8x32xf32>
    %83 = arith.mulf %81, %82 : vector<8x32xf32>
    %84 = vector.broadcast %63 : vector<1x32xf32> to vector<8x32xf32>
    %85 = arith.addf %83, %84 : vector<8x32xf32>
    %c0_40 = arith.constant 0 : index
    %c0_41 = arith.constant 0 : index
    %86 = vector.load %arg11[%c0_40, %c0_41] : memref<32x64xf32, #tpu.memory_space<vmem>>, vector<32x64xf32>
    %cst_42 = arith.constant dense<0.000000e+00> : vector<8x64xf32>
    %87 = tpu.matmul %85, %86, %cst_42 {dimension_numbers = #tpu.dot_dimension_numbers<[1], [0], [0], [1], [0, 0, 1, 1], [], []>} : vector<8x32xf32>, vector<32x64xf32>, vector<8x64xf32> -> vector<8x64xf32>
    %c0_43 = arith.constant 0 : index
    %c0_44 = arith.constant 0 : index
    %88 = vector.load %arg12[%c0_43, %c0_44] : memref<1x64xf32, #tpu.memory_space<vmem>>, vector<1x64xf32>
    %89 = vector.broadcast %88 : vector<1x64xf32> to vector<8x64xf32>
    %90 = arith.addf %87, %89 : vector<8x64xf32>
    %cst_45 = arith.constant 0.000000e+00 : f32
    %91 = vector.broadcast %cst_45 : f32 to vector<8x64xf32>
    %92 = arith.maximumf %90, %91 : vector<8x64xf32>
    %c0_46 = arith.constant 0 : index
    %c0_47 = arith.constant 0 : index
    %93 = vector.load %arg13[%c0_46, %c0_47] : memref<64x32xf32, #tpu.memory_space<vmem>>, vector<64x32xf32>
    %cst_48 = arith.constant dense<0.000000e+00> : vector<8x32xf32>
    %94 = tpu.matmul %92, %93, %cst_48 {dimension_numbers = #tpu.dot_dimension_numbers<[1], [0], [0], [1], [0, 0, 1, 1], [], []>} : vector<8x64xf32>, vector<64x32xf32>, vector<8x32xf32> -> vector<8x32xf32>
    %c0_49 = arith.constant 0 : index
    %c0_50 = arith.constant 0 : index
    %95 = vector.load %arg14[%c0_49, %c0_50] : memref<1x32xf32, #tpu.memory_space<vmem>>, vector<1x32xf32>
    %96 = vector.broadcast %95 : vector<1x32xf32> to vector<8x32xf32>
    %97 = arith.addf %94, %96 : vector<8x32xf32>
    %98 = arith.addf %85, %97 : vector<8x32xf32>
    %c0_51 = arith.constant 0 : index
    %c0_52 = arith.constant 0 : index
    %99 = vector.load %arg17[%c0_51, %c0_52] : memref<1x32xf32, #tpu.memory_space<vmem>>, vector<1x32xf32>
    %c0_53 = arith.constant 0 : index
    %c0_54 = arith.constant 0 : index
    %100 = vector.load %arg18[%c0_53, %c0_54] : memref<1x32xf32, #tpu.memory_space<vmem>>, vector<1x32xf32>
    %cst_55 = arith.constant dense<0.000000e+00> : vector<8xf32>
    %101 = vector.multi_reduction <add>, %98, %cst_55 [1] : vector<8x32xf32> to vector<8xf32>
    %102 = vector.shape_cast %101 : vector<8xf32> to vector<8x1xf32>
    %cst_56 = arith.constant 3.200000e+01 : f32
    %103 = vector.broadcast %cst_56 : f32 to vector<8x1xf32>
    %104 = arith.divf %102, %103 : vector<8x1xf32>
    %105 = vector.broadcast %104 : vector<8x1xf32> to vector<8x32xf32>
    %106 = arith.subf %98, %105 : vector<8x32xf32>
    %107 = arith.mulf %106, %106 : vector<8x32xf32>
    %cst_57 = arith.constant dense<0.000000e+00> : vector<8xf32>
    %108 = vector.multi_reduction <add>, %107, %cst_57 [1] : vector<8x32xf32> to vector<8xf32>
    %109 = vector.shape_cast %108 : vector<8xf32> to vector<8x1xf32>
    %cst_58 = arith.constant 3.200000e+01 : f32
    %110 = vector.broadcast %cst_58 : f32 to vector<8x1xf32>
    %111 = arith.divf %109, %110 : vector<8x1xf32>
    %112 = vector.broadcast %104 : vector<8x1xf32> to vector<8x32xf32>
    %113 = arith.subf %98, %112 : vector<8x32xf32>
    %cst_59 = arith.constant 9.99999974E-6 : f32
    %114 = vector.broadcast %cst_59 : f32 to vector<8x1xf32>
    %115 = arith.addf %111, %114 : vector<8x1xf32>
    %116 = math.rsqrt %115 : vector<8x1xf32>
    %117 = vector.broadcast %116 : vector<8x1xf32> to vector<8x32xf32>
    %118 = arith.mulf %113, %117 : vector<8x32xf32>
    %119 = vector.broadcast %99 : vector<1x32xf32> to vector<8x32xf32>
    %120 = arith.mulf %118, %119 : vector<8x32xf32>
    %121 = vector.broadcast %100 : vector<1x32xf32> to vector<8x32xf32>
    %122 = arith.addf %120, %121 : vector<8x32xf32>
    %c0_60 = arith.constant 0 : index
    %c0_61 = arith.constant 0 : index
    %123 = vector.load %arg19[%c0_60, %c0_61] : memref<8x32xf32, #tpu.memory_space<vmem>>, vector<8x32xf32>
    tpu.vector_store %arg19[%c0_60, %c0_61], %122 {strides = array<i32>} : memref<8x32xf32, #tpu.memory_space<vmem>>, vector<8x32xf32>,
    return
  }
  func.func @transform_0(%arg0: i32) -> (i32, i32) {
    %c0_i32 = arith.constant 0 : i32
    %c0_i32_0 = arith.constant 0 : i32
    return %arg0, %c0_i32 : i32, i32
  }
  func.func @transform_1(%arg0: i32) -> (i32, i32) {
    %c0_i32 = arith.constant 0 : i32
    %c0_i32_0 = arith.constant 0 : i32
    return %arg0, %c0_i32 : i32, i32
  }
  func.func @transform_2(%arg0: i32) -> (i32, i32) {
    %c0_i32 = arith.constant 0 : i32
    %c0_i32_0 = arith.constant 0 : i32
    %c0_i32_1 = arith.constant 0 : i32
    return %c0_i32, %c0_i32_0 : i32, i32
  }
  func.func @transform_3(%arg0: i32) -> (i32, i32) {
    %c0_i32 = arith.constant 0 : i32
    %c0_i32_0 = arith.constant 0 : i32
    %c0_i32_1 = arith.constant 0 : i32
    return %c0_i32, %c0_i32_0 : i32, i32
  }
  func.func @transform_4(%arg0: i32) -> (i32, i32) {
    %c0_i32 = arith.constant 0 : i32
    %c0_i32_0 = arith.constant 0 : i32
    %c0_i32_1 = arith.constant 0 : i32
    return %c0_i32, %c0_i32_0 : i32, i32
  }
  func.func @transform_5(%arg0: i32) -> (i32, i32) {
    %c0_i32 = arith.constant 0 : i32
    %c0_i32_0 = arith.constant 0 : i32
    %c0_i32_1 = arith.constant 0 : i32
    return %c0_i32, %c0_i32_0 : i32, i32
  }
  func.func @transform_6(%arg0: i32) -> (i32, i32) {
    %c0_i32 = arith.constant 0 : i32
    %c0_i32_0 = arith.constant 0 : i32
    %c0_i32_1 = arith.constant 0 : i32
    return %c0_i32, %c0_i32_0 : i32, i32
  }
  func.func @transform_7(%arg0: i32) -> (i32, i32) {
    %c0_i32 = arith.constant 0 : i32
    %c0_i32_0 = arith.constant 0 : i32
    %c0_i32_1 = arith.constant 0 : i32
    return %c0_i32, %c0_i32_0 : i32, i32
  }
  func.func @transform_8(%arg0: i32) -> (i32, i32) {
    %c0_i32 = arith.constant 0 : i32
    %c0_i32_0 = arith.constant 0 : i32
    %c0_i32_1 = arith.constant 0 : i32
    return %c0_i32, %c0_i32_0 : i32, i32
  }
  func.func @transform_9(%arg0: i32) -> (i32, i32) {
    %c0_i32 = arith.constant 0 : i32
    %c0_i32_0 = arith.constant 0 : i32
    %c0_i32_1 = arith.constant 0 : i32
    return %c0_i32, %c0_i32_0 : i32, i32
  }
  func.func @transform_10(%arg0: i32) -> (i32, i32) {
    %c0_i32 = arith.constant 0 : i32
    %c0_i32_0 = arith.constant 0 : i32
    %c0_i32_1 = arith.constant 0 : i32
    return %c0_i32, %c0_i32_0 : i32, i32
  }
  func.func @transform_11(%arg0: i32) -> (i32, i32) {
    %c0_i32 = arith.constant 0 : i32
    %c0_i32_0 = arith.constant 0 : i32
    %c0_i32_1 = arith.constant 0 : i32
    return %c0_i32, %c0_i32_0 : i32, i32
  }
  func.func @transform_12(%arg0: i32) -> (i32, i32) {
    %c0_i32 = arith.constant 0 : i32
    %c0_i32_0 = arith.constant 0 : i32
    %c0_i32_1 = arith.constant 0 : i32
    return %c0_i32, %c0_i32_0 : i32, i32
  }
  func.func @transform_13(%arg0: i32) -> (i32, i32) {
    %c0_i32 = arith.constant 0 : i32
    %c0_i32_0 = arith.constant 0 : i32
    %c0_i32_1 = arith.constant 0 : i32
    return %c0_i32, %c0_i32_0 : i32, i32
  }
  func.func @transform_14(%arg0: i32) -> (i32, i32) {
    %c0_i32 = arith.constant 0 : i32
    %c0_i32_0 = arith.constant 0 : i32
    %c0_i32_1 = arith.constant 0 : i32
    return %c0_i32, %c0_i32_0 : i32, i32
  }
  func.func @transform_15(%arg0: i32) -> (i32, i32) {
    %c0_i32 = arith.constant 0 : i32
    %c0_i32_0 = arith.constant 0 : i32
    %c0_i32_1 = arith.constant 0 : i32
    return %c0_i32, %c0_i32_0 : i32, i32
  }
  func.func @transform_16(%arg0: i32) -> (i32, i32) {
    %c0_i32 = arith.constant 0 : i32
    %c0_i32_0 = arith.constant 0 : i32
    %c0_i32_1 = arith.constant 0 : i32
    return %c0_i32, %c0_i32_0 : i32, i32
  }
  func.func @transform_17(%arg0: i32) -> (i32, i32) {
    %c0_i32 = arith.constant 0 : i32
    %c0_i32_0 = arith.constant 0 : i32
    %c0_i32_1 = arith.constant 0 : i32
    return %c0_i32, %c0_i32_0 : i32, i32
  }
  func.func @transform_18(%arg0: i32) -> (i32, i32) {
    %c0_i32 = arith.constant 0 : i32
    %c0_i32_0 = arith.constant 0 : i32
    return %arg0, %c0_i32 : i32, i32
  }
}

</mosaic_0001>

<llo_original>
// kernel: self_attn_forward.2
$region0: #{self_attn_forward.2}
  #allocation0 [shape = 'u32[]', space=smem, size = 0x4, offset = 0x4, fixed_abs, tag = 'smem constant byte address 0x4 - core index']
  #allocation1 [shape = 'u32[72,128]{1,0:T(1,128)}', space=vmem, size = 0x9000, scoped, tag = 'internal scratch']
  %s0 = inlined_call_operand.hbm [shape: f32[16,32], index: 0, kind: input, shape index: {}]
  %s1 = inlined_call_operand.hbm [shape: f32[32,32], index: 1, kind: input, shape index: {}]
  %s2 = inlined_call_operand.vmem [shape: f32[1,32], index: 2, kind: input, shape index: {}]
  %s3 = inlined_call_operand.hbm [shape: f32[32,32], index: 3, kind: input, shape index: {}]
  %s4 = inlined_call_operand.vmem [shape: f32[1,32], index: 4, kind: input, shape index: {}]
  %s5 = inlined_call_operand.vmem [shape: f32[16,32], index: 5, kind: output, shape index: {0}]
  %s6 = inlined_call_operand.vmem [shape: f32[16,32], index: 6, kind: output, shape index: {1}]
  %7 = xla_tuple %s5, %s6
  %s8 = sld [smem:[#allocation0]]
  $region73: #{self_attn_forward.2} parent=0
    _
  %s10 = ssub.s32 1, %s8
  %s11 = scalar_select 0, %s10, %s8
  $region1: #{self_attn_forward.2} parent=0
    #allocation2 [shape = 'u8[8192]{0}', space=vmem, size = 0x2000, scoped, tag = 'input window, operand 0']
    #allocation3 [shape = 's32[2]{0}', space=sflag, size = 0x8, scoped, tag = 'scoped memory for self_attn_forward.2']
    #allocation4 [shape = 'u8[16384]{0}', space=vmem, size = 0x4000, scoped, tag = 'input window, operand 1, single buffered']
    #allocation5 [shape = 's32[1]{0}', space=sflag, size = 0x4, scoped, tag = 'scoped memory for self_attn_forward.2']
    #allocation6 [shape = 'u8[16384]{0}', space=vmem, size = 0x4000, scoped, tag = 'input window, operand 3, single buffered']
    %12 = vsyncpa [#allocation3], 0
    %s13 = scalar_lea.sflag [#allocation3], 1
    %14 = vsyncpa %s13, 0
    %15 = vsyncpa [#allocation5], 0
    loop: start=0, step=1, limit=4
    $region2: #{self_attn_forward.2} parent=1 // loop_pre_header
      _
    $region3: #{self_attn_forward.2} parent=1 // loop_header
      %s17 = sphi 0, %s21
      %p18 = scmp.ge.s32.totalorder %s17, 4
      %s27 = sphi 0, %s29
      %s30 = sphi 0, %s27
      %s31 = sphi 0, %s30
      %s47 = sphi 0, %s31
      %s51 = sphi 0, %s51
      %s53 = sphi 0, %s51
      %s54 = sphi 0, %s53
      %s68 = sphi 0, %s54
      %s72 = sphi 0, %s72
      %s74 = sphi 0, %s72
      %s75 = sphi 0, %s74
      %s89 = sphi 0, %s75
      %s93 = sphi 0, %s93
      %s95 = sphi 0, %s93
      %s96 = sphi 0, %s95
      %s110 = sphi 0, %s96
      %s114 = sphi 0, %s114
      %s116 = sphi 0, %s114
      %s117 = sphi 0, %s116
      %s131 = sphi 0, %s117
      %s137 = sphi 0, %s139
      %s140 = sphi 0, %s137
      %s141 = sphi 0, %s140
      %s157 = sphi 0, %s141
      %s163 = sphi 0, %s165
      %s166 = sphi 0, %s163
      %s167 = sphi 0, %s166
      %s183 = sphi 0, %s167
    $region4: #{self_attn_forward.2} parent=1 // loop_header_branch
      %20 = sbr.rel (%p18) target = $region8
    $region5: #{self_attn_forward.2} parent=1 // loop_body
      %s22 = ssub.s32 %s17, 1
      %s23 = ssub.s32 %s17, 2
      %s24 = sadd.s32 %s17, 1
      %s25 = ssub.s32 %s17, %s24
      %p26 = scmp.eq.s32.totalorder %s25, 0
      %s28 = sadd.s32 %s27, 1
      %s29 = scalar_select %p26, %s27, %s28
      %p32 = pneg %p26
      %p33 = scmp.eq.s32.totalorder %s17, 1
      %p34 = por %p32, %p33
      %p35 = scmp.ne.s32.totalorder %s27, %s30
      %p36 = scmp.eq.s32.totalorder %s17, 0
      %p37 = por %p35, %p36
      %p38 = scmp.ne.s32.totalorder %s27, %s30
      %p39 = scmp.eq.s32.totalorder %s22, 1
      %p40 = por %p38, %p39
      %p41 = scmp.ne.s32.totalorder %s30, %s31
      %p42 = scmp.eq.s32.totalorder %s22, 0
      %p43 = por %p41, %p42
      %p44 = scmp.ne.s32.totalorder %s30, %s31
      %p45 = scmp.eq.s32.totalorder %s23, 1
      %p46 = por %p44, %p45
      %p48 = scmp.ne.s32.totalorder %s31, %s47
      %p49 = scmp.eq.s32.totalorder %s23, 0
      %p50 = por %p48, %p49
      %s52 = sadd.s32 %s51, 1
      %p55 = scmp.eq.s32.totalorder %s17, 1
      %p56 = scmp.ne.s32.totalorder %s51, %s53
      %p57 = scmp.eq.s32.totalorder %s17, 0
      %p58 = por %p56, %p57
      %p59 = scmp.ne.s32.totalorder %s51, %s53
      %p60 = scmp.eq.s32.totalorder %s22, 1
      %p61 = por %p59, %p60
      %p62 = scmp.ne.s32.totalorder %s53, %s54
      %p63 = scmp.eq.s32.totalorder %s22, 0
      %p64 = por %p62, %p63
      %p65 = scmp.ne.s32.totalorder %s53, %s54
      %p66 = scmp.eq.s32.totalorder %s23, 1
      %p67 = por %p65, %p66
      %p69 = scmp.ne.s32.totalorder %s54, %s68
      %p70 = scmp.eq.s32.totalorder %s23, 0
      %p71 = por %p69, %p70
      %s73 = sadd.s32 %s72, 1
      %p76 = scmp.eq.s32.totalorder %s17, 1
      %p77 = scmp.ne.s32.totalorder %s72, %s74
      %p78 = scmp.eq.s32.totalorder %s17, 0
      %p79 = por %p77, %p78
      %p80 = scmp.ne.s32.totalorder %s72, %s74
      %p81 = scmp.eq.s32.totalorder %s22, 1
      %p82 = por %p80, %p81
      %p83 = scmp.ne.s32.totalorder %s74, %s75
      %p84 = scmp.eq.s32.totalorder %s22, 0
      %p85 = por %p83, %p84
      %p86 = scmp.ne.s32.totalorder %s74, %s75
      %p87 = scmp.eq.s32.totalorder %s23, 1
      %p88 = por %p86, %p87
      %p90 = scmp.ne.s32.totalorder %s75, %s89
      %p91 = scmp.eq.s32.totalorder %s23, 0
      %p92 = por %p90, %p91
      %s94 = sadd.s32 %s93, 1
      %p97 = scmp.eq.s32.totalorder %s17, 1
      %p98 = scmp.ne.s32.totalorder %s93, %s95
      %p99 = scmp.eq.s32.totalorder %s17, 0
      %p100 = por %p98, %p99
      %p101 = scmp.ne.s32.totalorder %s93, %s95
      %p102 = scmp.eq.s32.totalorder %s22, 1
      %p103 = por %p101, %p102
      %p104 = scmp.ne.s32.totalorder %s95, %s96
      %p105 = scmp.eq.s32.totalorder %s22, 0
      %p106 = por %p104, %p105
      %p107 = scmp.ne.s32.totalorder %s95, %s96
      %p108 = scmp.eq.s32.totalorder %s23, 1
      %p109 = por %p107, %p108
      %p111 = scmp.ne.s32.totalorder %s96, %s110
      %p112 = scmp.eq.s32.totalorder %s23, 0
      %p113 = por %p111, %p112
      %s115 = sadd.s32 %s114, 1
      %p118 = scmp.eq.s32.totalorder %s17, 1
      %p119 = scmp.ne.s32.totalorder %s114, %s116
      %p120 = scmp.eq.s32.totalorder %s17, 0
      %p121 = por %p119, %p120
      %p122 = scmp.ne.s32.totalorder %s114, %s116
      %p123 = scmp.eq.s32.totalorder %s22, 1
      %p124 = por %p122, %p123
      %p125 = scmp.ne.s32.totalorder %s116, %s117
      %p126 = scmp.eq.s32.totalorder %s22, 0
      %p127 = por %p125, %p126
      %p128 = scmp.ne.s32.totalorder %s116, %s117
      %p129 = scmp.eq.s32.totalorder %s23, 1
      %p130 = por %p128, %p129
      %p132 = scmp.ne.s32.totalorder %s117, %s131
      %p133 = scmp.eq.s32.totalorder %s23, 0
      %p134 = por %p132, %p133
      %s135 = ssub.s32 %s17, %s24
      %p136 = scmp.eq.s32.totalorder %s135, 0
      %s138 = sadd.s32 %s137, 1
      %s139 = scalar_select %p136, %s137, %s138
      %p142 = pneg %p136
      %p143 = scmp.eq.s32.totalorder %s17, 1
      %p144 = por %p142, %p143
      %p145 = scmp.ne.s32.totalorder %s137, %s140
      %p146 = scmp.eq.s32.totalorder %s17, 0
      %p147 = por %p145, %p146
      %p148 = scmp.ne.s32.totalorder %s137, %s140
      %p149 = scmp.eq.s32.totalorder %s22, 1
      %p150 = por %p148, %p149
      %p151 = scmp.ne.s32.totalorder %s140, %s141
      %p152 = scmp.eq.s32.totalorder %s22, 0
      %p153 = por %p151, %p152
      %p154 = scmp.ne.s32.totalorder %s140, %s141
      %p155 = scmp.eq.s32.totalorder %s23, 1
      %p156 = por %p154, %p155
      %p158 = scmp.ne.s32.totalorder %s141, %s157
      %p159 = scmp.eq.s32.totalorder %s23, 0
      %p160 = por %p158, %p159
      %s161 = ssub.s32 %s17, %s24
      %p162 = scmp.eq.s32.totalorder %s161, 0
      %s164 = sadd.s32 %s163, 1
      %s165 = scalar_select %p162, %s163, %s164
      %p168 = pneg %p162
      %p169 = scmp.eq.s32.totalorder %s17, 1
      %p170 = por %p168, %p169
      %p171 = scmp.ne.s32.totalorder %s163, %s166
      %p172 = scmp.eq.s32.totalorder %s17, 0
      %p173 = por %p171, %p172
      %p174 = scmp.ne.s32.totalorder %s163, %s166
      %p175 = scmp.eq.s32.totalorder %s22, 1
      %p176 = por %p174, %p175
      %p177 = scmp.ne.s32.totalorder %s166, %s167
      %p178 = scmp.eq.s32.totalorder %s22, 0
      %p179 = por %p177, %p178
      %p180 = scmp.ne.s32.totalorder %s166, %s167
      %p181 = scmp.eq.s32.totalorder %s23, 1
      %p182 = por %p180, %p181
      %p184 = scmp.ne.s32.totalorder %s167, %s183
      %p185 = scmp.eq.s32.totalorder %s23, 0
      %p186 = por %p184, %p185
      %p187 = scmp.le.s32.totalorder 1, %s17
      %p188 = scmp.lt.s32.totalorder %s17, 3
      %p189 = pnand %p187, %p188
      %p190 = pneg %p189
      // Predicated region
      $region9: #{self_attn_forward.2} parent=5 // pred_check
        _
      $region10: #{self_attn_forward.2} parent=5 // pred_check_branch
        %192 = sbr.rel (%p189) target = $region12
      $region11: #{self_attn_forward.2} parent=5 // pred_region
        %s193 = ssub.s32 %s17, 1
        // Predicated region
        $region13: #{self_attn_forward.2} parent=11 // pred_check
          %p194 = pneg %p64
        $region14: #{self_attn_forward.2} parent=11 // pred_check_branch
          %196 = sbr.rel (%p194) target = $region16
        $region15: #{self_attn_forward.2} parent=11 // pred_region
          %198 = vsyncadd [#allocation5], 0
          %s199 = sshll.u32 %s1, 4
          %s200 = int_to_ptr.hbm [resolvable:$true] %s199
          %s201 = sshll.u32 [#allocation4], 4
          %s202 = int_to_ptr.vmem [resolvable:$true] %s201
          %207 = dma.hbm_to_vmem [thread:$0]  %s200, 512, %s202, [#allocation5], 128, 128, 8
        $region16: #{self_attn_forward.2} parent=11 // pred_fallthru
          _
        // Predicated region
        $region17: #{self_attn_forward.2} parent=11 // pred_check
          %p208 = pneg %p85
        $region18: #{self_attn_forward.2} parent=11 // pred_check_branch
          %210 = sbr.rel (%p208) target = $region20
        $region19: #{self_attn_forward.2} parent=11 // pred_region
          _
        $region20: #{self_attn_forward.2} parent=11 // pred_fallthru
          _
        // Predicated region
        $region21: #{self_attn_forward.2} parent=11 // pred_check
          %p211 = pneg %p106
        $region22: #{self_attn_forward.2} parent=11 // pred_check_branch
          %213 = sbr.rel (%p211) target = $region24
        $region23: #{self_attn_forward.2} parent=11 // pred_region
          %215 = vsyncadd [#allocation5], 0
          %s216 = sshll.u32 %s3, 4
          %s217 = int_to_ptr.hbm [resolvable:$true] %s216
          %s218 = sshll.u32 [#allocation6], 4
          %s219 = int_to_ptr.vmem [resolvable:$true] %s218
          %224 = dma.hbm_to_vmem [thread:$0]  %s217, 512, %s219, [#allocation5], 128, 128, 8
        $region24: #{self_attn_forward.2} parent=11 // pred_fallthru
          _
        // Predicated region
        $region25: #{self_attn_forward.2} parent=11 // pred_check
          %p225 = pneg %p127
        $region26: #{self_attn_forward.2} parent=11 // pred_check_branch
          %227 = sbr.rel (%p225) target = $region28
        $region27: #{self_attn_forward.2} parent=11 // pred_region
          _
        $region28: #{self_attn_forward.2} parent=11 // pred_fallthru
          _
      $region12: #{self_attn_forward.2} parent=5 // pred_fallthru
        _
      %p228 = scmp.lt.s32.totalorder %s17, 2
      // Predicated region
      $region29: #{self_attn_forward.2} parent=5 // pred_check
        %p229 = pneg %p228
      $region30: #{self_attn_forward.2} parent=5 // pred_check_branch
        %231 = sbr.rel (%p229) target = $region32
      $region31: #{self_attn_forward.2} parent=5 // pred_region
        // Predicated region
        $region33: #{self_attn_forward.2} parent=31 // pred_check
          %p232 = pneg %p37
        $region34: #{self_attn_forward.2} parent=31 // pred_check_branch
          %234 = sbr.rel (%p232) target = $region36
        $region35: #{self_attn_forward.2} parent=31 // pred_region
          %s235 = sand.u32 %s27, 1
          %s236 = scalar_lea.sflag [#allocation3], %s235
          %s237 = sand.u32 %s27, 1
          %s238 = smul.addr %s237, 8
          %s239 = scalar_lea.vmem [#allocation2], %s238
          %241 = vsyncadd %s236, 0
          %s242 = smul.addr %s17, 8
          %s243 = scalar_lea.hbm %s0, %s242
          %s245 = sshll.u32 %s243, 4
          %s246 = int_to_ptr.hbm [resolvable:$true] %s245
          %s247 = sshll.u32 %s239, 4
          %s248 = int_to_ptr.vmem [resolvable:$true] %s247
          %250 = dma.hbm_to_vmem [thread:$0]  %s246, 128, %s248, %s236
        $region36: #{self_attn_forward.2} parent=31 // pred_fallthru
          _
      $region32: #{self_attn_forward.2} parent=5 // pred_fallthru
        _
      %p251 = scmp.le.s32.totalorder 1, %s17
      %p252 = scmp.lt.s32.totalorder %s17, 3
      %p253 = pnand %p251, %p252
      %p254 = pneg %p253
      // Predicated region
      $region37: #{self_attn_forward.2} parent=5 // pred_check
        _
      $region38: #{self_attn_forward.2} parent=5 // pred_check_branch
        %256 = sbr.rel (%p253) target = $region40
      $region39: #{self_attn_forward.2} parent=5 // pred_region
        %s257 = ssub.s32 %s17, 1
        %s258 = sand.u32 %s30, 1
        %s259 = scalar_lea.sflag [#allocation3], %s258
        %s260 = sand.u32 %s30, 1
        %s261 = smul.addr %s260, 8
        %s262 = scalar_lea.vmem [#allocation2], %s261
        // Predicated region
        $region41: #{self_attn_forward.2} parent=39 // pred_check
          %p263 = pneg %p43
        $region42: #{self_attn_forward.2} parent=39 // pred_check_branch
          %265 = sbr.rel (%p263) target = $region44
        $region43: #{self_attn_forward.2} parent=39 // pred_region
          %267 = dma.done %s259, 128
        $region44: #{self_attn_forward.2} parent=39 // pred_fallthru
          _
        // Predicated region
        $region45: #{self_attn_forward.2} parent=39 // pred_check
          %p268 = pneg %p64
        $region46: #{self_attn_forward.2} parent=39 // pred_check_branch
          %270 = sbr.rel (%p268) target = $region48
        $region47: #{self_attn_forward.2} parent=39 // pred_region
          %272 = dma.done [#allocation5], 512
        $region48: #{self_attn_forward.2} parent=39 // pred_fallthru
          _
        // Predicated region
        $region49: #{self_attn_forward.2} parent=39 // pred_check
          %p273 = pneg %p106
        $region50: #{self_attn_forward.2} parent=39 // pred_check_branch
          %275 = sbr.rel (%p273) target = $region52
        $region51: #{self_attn_forward.2} parent=39 // pred_region
          %277 = dma.done [#allocation5], 512
        $region52: #{self_attn_forward.2} parent=39 // pred_fallthru
          _
        %s278 = sand.u32 %s30, 1
        %s279 = scalar_lea.sflag [#allocation3], %s278
        %s280 = sand.u32 %s30, 1
        %s281 = smul.addr %s280, 8
        %s282 = scalar_lea.vmem [#allocation2], %s281
        %p283 = pneg %p43
        %p284 = pneg %p40
        %p285 = pneg %p64
        %p286 = pneg %p61
        %p287 = pneg %p85
        %p288 = pneg %p82
        %p289 = pneg %p106
        %p290 = pneg %p103
        %p291 = pneg %p127
        %p292 = pneg %p124
        %p293 = pneg %p153
        %p294 = pneg %p150
        %p295 = scmp.lt.s32.totalorder %s22, 1
        %s296 = scalar_select %p295, %s22, 1
        %s297 = smul.addr %s296, 8
        %s298 = scalar_lea.vmem %s5, %s297
        %p299 = pneg %p179
        %p300 = pneg %p176
        %p301 = scmp.lt.s32.totalorder %s22, 1
        %s302 = scalar_select %p301, %s22, 1
        %s303 = smul.addr %s302, 8
        %s304 = scalar_lea.vmem %s6, %s303
        %p305 = scmp.lt.s32.totalorder %s22, 1
        %s306 = scalar_select %p305, %s22, 1
        %s307 = smul.addr %s306, 8
        %s308 = scalar_lea.vmem %s5, %s307
        %p309 = scmp.lt.s32.totalorder %s22, 1
        %s310 = scalar_select %p309, %s22, 1
        %s311 = smul.addr %s310, 8
        %s312 = scalar_lea.vmem %s6, %s311
        %v313 = vld [vmem:[%s262] sm:$0xff]
        %v314 = vld [vmem:[#allocation4] sm:$0xff]
        %v315 = vld [vmem:[#allocation4 + $0x8] sm:$0xff]
        %v316 = vld [vmem:[#allocation4 + $0x10] sm:$0xff]
        %v317 = vld [vmem:[#allocation4 + $0x18] sm:$0xff]
        %v318 = vld [vmem:[%s2] sm:$0x1]
        %v320 = vperm.slane %v318, 0
        %vm322 = vcmask 261120
        %v324 = vsel %vm322, %v313, 0
        %326 = vmatpush.msra.mxu0 0.0
        %327 = vmatpush.msra.mxu0 0.0
        %328 = vmatpush.msra.mxu0 0.0
        %329 = vmatpush.msra.mxu0 0.0
        %330 = vmatpush.msra.mxu0 0.0
        %331 = vmatpush.msra.mxu0 0.0
        %332 = vmatpush.msra.mxu0 0.0
        %333 = vmatpush.msra.mxu0 0.0
        %334 = vmatpush.msra.mxu0 0.0
        %335 = vmatpush.msra.mxu0 0.0
        %336 = vmatpush.msra.mxu0 0.0
        %337 = vmatpush.msra.mxu0 0.0
        %338 = vmatpush.msra.mxu0 %v317
        %339 = vmatpush.msra.mxu0 %v316
        %340 = vmatpush.msra.mxu0 %v315
        %341 = vmatpush.msra.mxu0 %v314
        %342 = vmatmul.f32.gmra.mxu0 %v324
        %v343 = vpop.f32.mrf.mxu0
        %v344 = vadd.f32 %v320, %v343
        %345 = vdwg.mxu0
        %346 = vst.msk [vmem:[%s308] sm:$0xff] %vm322, %v344
        %v347 = vld [vmem:[#allocation6] sm:$0xff]
        %v348 = vld [vmem:[#allocation6 + $0x8] sm:$0xff]
        %v349 = vld [vmem:[#allocation6 + $0x10] sm:$0xff]
        %v350 = vld [vmem:[#allocation6 + $0x18] sm:$0xff]
        %v351 = vld [vmem:[%s4] sm:$0x1]
        %v353 = vperm.slane %v351, 0
        %355 = vmatpush.msra.mxu0 0.0
        %356 = vmatpush.msra.mxu0 0.0
        %357 = vmatpush.msra.mxu0 0.0
        %358 = vmatpush.msra.mxu0 0.0
        %359 = vmatpush.msra.mxu0 0.0
        %360 = vmatpush.msra.mxu0 0.0
        %361 = vmatpush.msra.mxu0 0.0
        %362 = vmatpush.msra.mxu0 0.0
        %363 = vmatpush.msra.mxu0 0.0
        %364 = vmatpush.msra.mxu0 0.0
        %365 = vmatpush.msra.mxu0 0.0
        %366 = vmatpush.msra.mxu0 0.0
        %367 = vmatpush.msra.mxu0 %v350
        %368 = vmatpush.msra.mxu0 %v349
        %369 = vmatpush.msra.mxu0 %v348
        %370 = vmatpush.msra.mxu0 %v347
        %371 = vmatmul.f32.gmra.mxu0 %v324
        %v372 = vpop.f32.mrf.mxu0
        %v373 = vadd.f32 %v353, %v372
        %374 = vdwg.mxu0
        %375 = vst.msk [vmem:[%s312] sm:$0xff] %vm322, %v373
        %p376 = scmp.lt.s32.totalorder %s22, 1
        %s377 = scalar_select %p376, %s22, 1
        %s378 = smul.addr %s377, 8
        %s379 = scalar_lea.vmem %s5, %s378
        %p380 = scmp.lt.s32.totalorder %s22, 1
        %s381 = scalar_select %p380, %s22, 1
        %s382 = smul.addr %s381, 8
        %s383 = scalar_lea.vmem %s6, %s382
        // Predicated region
        $region53: #{self_attn_forward.2} parent=39 // pred_check
          %p384 = pneg %p150
        $region54: #{self_attn_forward.2} parent=39 // pred_check_branch
          %386 = sbr.rel (%p384) target = $region56
        $region55: #{self_attn_forward.2} parent=39 // pred_region
          _
        $region56: #{self_attn_forward.2} parent=39 // pred_fallthru
          _
        // Predicated region
        $region57: #{self_attn_forward.2} parent=39 // pred_check
          %p387 = pneg %p176
        $region58: #{self_attn_forward.2} parent=39 // pred_check_branch
          %389 = sbr.rel (%p387) target = $region60
        $region59: #{self_attn_forward.2} parent=39 // pred_region
          _
        $region60: #{self_attn_forward.2} parent=39 // pred_fallthru
          _
      $region40: #{self_attn_forward.2} parent=5 // pred_fallthru
        _
      %p390 = scmp.le.s32.totalorder 2, %s17
      // Predicated region
      $region61: #{self_attn_forward.2} parent=5 // pred_check
        %p391 = pneg %p390
      $region62: #{self_attn_forward.2} parent=5 // pred_check_branch
        %393 = sbr.rel (%p391) target = $region64
      $region63: #{self_attn_forward.2} parent=5 // pred_region
        %s394 = ssub.s32 %s17, 2
        // Predicated region
        $region65: #{self_attn_forward.2} parent=63 // pred_check
          %p395 = pneg %p156
        $region66: #{self_attn_forward.2} parent=63 // pred_check_branch
          %397 = sbr.rel (%p395) target = $region68
        $region67: #{self_attn_forward.2} parent=63 // pred_region
          %p398 = scmp.lt.s32.totalorder %s23, 1
          %s399 = scalar_select %p398, %s23, 1
          %s400 = smul.addr %s399, 8
          %s401 = scalar_lea.vmem %s5, %s400
        $region68: #{self_attn_forward.2} parent=63 // pred_fallthru
          _
        // Predicated region
        $region69: #{self_attn_forward.2} parent=63 // pred_check
          %p402 = pneg %p182
        $region70: #{self_attn_forward.2} parent=63 // pred_check_branch
          %404 = sbr.rel (%p402) target = $region72
        $region71: #{self_attn_forward.2} parent=63 // pred_region
          %p405 = scmp.lt.s32.totalorder %s23, 1
          %s406 = scalar_select %p405, %s23, 1
          %s407 = smul.addr %s406, 8
          %s408 = scalar_lea.vmem %s6, %s407
        $region72: #{self_attn_forward.2} parent=63 // pred_fallthru
          _
      $region64: #{self_attn_forward.2} parent=5 // pred_fallthru
        _
    $region6: #{self_attn_forward.2} parent=1 // loop_footer
      %s21 = sadd.s32 1, %s17
    $region7: #{self_attn_forward.2} parent=1 // loop_footer_branch
      %16 = sbr.rel target = $region3
    $region8: #{self_attn_forward.2} parent=1 // loop_exit
      _
    %409 = vsyncpa [#allocation3], 1
    %s410 = scalar_lea.sflag [#allocation3], 1
    %411 = vsyncpa %s410, 1
    %412 = vsyncpa [#allocation5], 1

// kernel: self_attn_forward.3
$region0: #{self_attn_forward.3}
  #allocation0 [shape = 'u32[]', space=smem, size = 0x4, offset = 0x4, fixed_abs, tag = 'smem constant byte address 0x4 - core index']
  #allocation1 [shape = 'u32[72,128]{1,0:T(1,128)}', space=vmem, size = 0x9000, scoped, tag = 'internal scratch']
  %s0 = inlined_call_operand.hbm [shape: f32[16,32], index: 0, kind: input, shape index: {}]
  %s1 = inlined_call_operand.vmem [shape: s32[16,1], index: 1, kind: input, shape index: {}]
  %s2 = inlined_call_operand.vmem [shape: s32[1,16], index: 2, kind: input, shape index: {}]
  %s3 = inlined_call_operand.vmem [shape: f32[1,16], index: 3, kind: input, shape index: {}]
  %s4 = inlined_call_operand.vmem [shape: f32[16,32], index: 4, kind: input, shape index: {}]
  %s5 = inlined_call_operand.vmem [shape: f32[16,32], index: 5, kind: input, shape index: {}]
  %s6 = inlined_call_operand.vmem [shape: f32[32,32], index: 6, kind: input, shape index: {}]
  %s7 = inlined_call_operand.vmem [shape: f32[1,32], index: 7, kind: input, shape index: {}]
  %s8 = inlined_call_operand.vmem [shape: f32[32,32], index: 8, kind: input, shape index: {}]
  %s9 = inlined_call_operand.vmem [shape: f32[1,32], index: 9, kind: input, shape index: {}]
  %s10 = inlined_call_operand.vmem [shape: f32[32,64], index: 10, kind: input, shape index: {}]
  %s11 = inlined_call_operand.vmem [shape: f32[1,64], index: 11, kind: input, shape index: {}]
  %s12 = inlined_call_operand.vmem [shape: f32[64,32], index: 12, kind: input, shape index: {}]
  %s13 = inlined_call_operand.vmem [shape: f32[1,32], index: 13, kind: input, shape index: {}]
  %s14 = inlined_call_operand.vmem [shape: f32[1,32], index: 14, kind: input, shape index: {}]
  %s15 = inlined_call_operand.vmem [shape: f32[1,32], index: 15, kind: input, shape index: {}]
  %s16 = inlined_call_operand.vmem [shape: f32[1,32], index: 16, kind: input, shape index: {}]
  %s17 = inlined_call_operand.vmem [shape: f32[1,32], index: 17, kind: input, shape index: {}]
  %s18 = inlined_call_operand.hbm [shape: f32[16,32], index: 18, kind: output, shape index: {}]
  %s19 = sld [smem:[#allocation0]]
  $region109: #{self_attn_forward.3} parent=0
    _
  %s21 = ssub.s32 1, %s19
  %s22 = scalar_select 0, %s21, %s19
  $region1: #{self_attn_forward.3} parent=0
    #allocation2 [shape = 'u8[8192]{0}', space=vmem, size = 0x2000, scoped, tag = 'input window, operand 0']
    #allocation3 [shape = 's32[2]{0}', space=sflag, size = 0x8, scoped, tag = 'scoped memory for self_attn_forward.3']
    #allocation4 [shape = 's32[2]{0}', space=sflag, size = 0x8, scoped, tag = 'scoped memory for self_attn_forward.3']
    #allocation5 [shape = 'u8[8192]{0}', space=vmem, size = 0x2000, scoped, tag = 'output window, operand 0']
    %23 = vsyncpa [#allocation3], 0
    %s24 = scalar_lea.sflag [#allocation3], 1
    %25 = vsyncpa %s24, 0
    %26 = vsyncpa [#allocation4], 0
    %s27 = scalar_lea.sflag [#allocation4], 1
    %28 = vsyncpa %s27, 0
    loop: start=0, step=1, limit=4
    $region2: #{self_attn_forward.3} parent=1 // loop_pre_header
      _
    $region3: #{self_attn_forward.3} parent=1 // loop_header
      %s30 = sphi 0, %s34
      %p31 = scmp.ge.s32.totalorder %s30, 4
      %s40 = sphi 0, %s42
      %s43 = sphi 0, %s40
      %s44 = sphi 0, %s43
      %s60 = sphi 0, %s44
      %s66 = sphi 0, %s68
      %s69 = sphi 0, %s66
      %s70 = sphi 0, %s69
      %s86 = sphi 0, %s70
      %s90 = sphi 0, %s90
      %s92 = sphi 0, %s90
      %s93 = sphi 0, %s92
      %s107 = sphi 0, %s93
      %s111 = sphi 0, %s111
      %s113 = sphi 0, %s111
      %s114 = sphi 0, %s113
      %s128 = sphi 0, %s114
      %s132 = sphi 0, %s132
      %s134 = sphi 0, %s132
      %s135 = sphi 0, %s134
      %s149 = sphi 0, %s135
      %s153 = sphi 0, %s153
      %s155 = sphi 0, %s153
      %s156 = sphi 0, %s155
      %s170 = sphi 0, %s156
      %s174 = sphi 0, %s174
      %s176 = sphi 0, %s174
      %s177 = sphi 0, %s176
      %s191 = sphi 0, %s177
      %s195 = sphi 0, %s195
      %s197 = sphi 0, %s195
      %s198 = sphi 0, %s197
      %s212 = sphi 0, %s198
      %s216 = sphi 0, %s216
      %s218 = sphi 0, %s216
      %s219 = sphi 0, %s218
      %s233 = sphi 0, %s219
      %s237 = sphi 0, %s237
      %s239 = sphi 0, %s237
      %s240 = sphi 0, %s239
      %s254 = sphi 0, %s240
      %s258 = sphi 0, %s258
      %s260 = sphi 0, %s258
      %s261 = sphi 0, %s260
      %s275 = sphi 0, %s261
      %s279 = sphi 0, %s279
      %s281 = sphi 0, %s279
      %s282 = sphi 0, %s281
      %s296 = sphi 0, %s282
      %s300 = sphi 0, %s300
      %s302 = sphi 0, %s300
      %s303 = sphi 0, %s302
      %s317 = sphi 0, %s303
      %s321 = sphi 0, %s321
      %s323 = sphi 0, %s321
      %s324 = sphi 0, %s323
      %s338 = sphi 0, %s324
      %s342 = sphi 0, %s342
      %s344 = sphi 0, %s342
      %s345 = sphi 0, %s344
      %s359 = sphi 0, %s345
      %s363 = sphi 0, %s363
      %s365 = sphi 0, %s363
      %s366 = sphi 0, %s365
      %s380 = sphi 0, %s366
      %s384 = sphi 0, %s384
      %s386 = sphi 0, %s384
      %s387 = sphi 0, %s386
      %s401 = sphi 0, %s387
      %s405 = sphi 0, %s405
      %s407 = sphi 0, %s405
      %s408 = sphi 0, %s407
      %s422 = sphi 0, %s408
      %s428 = sphi 0, %s430
      %s431 = sphi 0, %s428
      %s432 = sphi 0, %s431
      %s448 = sphi 0, %s432
    $region4: #{self_attn_forward.3} parent=1 // loop_header_branch
      %33 = sbr.rel (%p31) target = $region8
    $region5: #{self_attn_forward.3} parent=1 // loop_body
      %s35 = ssub.s32 %s30, 1
      %s36 = ssub.s32 %s30, 2
      %s37 = sadd.s32 %s30, 1
      %s38 = ssub.s32 %s30, %s37
      %p39 = scmp.eq.s32.totalorder %s38, 0
      %s41 = sadd.s32 %s40, 1
      %s42 = scalar_select %p39, %s40, %s41
      %p45 = pneg %p39
      %p46 = scmp.eq.s32.totalorder %s30, 1
      %p47 = por %p45, %p46
      %p48 = scmp.ne.s32.totalorder %s40, %s43
      %p49 = scmp.eq.s32.totalorder %s30, 0
      %p50 = por %p48, %p49
      %p51 = scmp.ne.s32.totalorder %s40, %s43
      %p52 = scmp.eq.s32.totalorder %s35, 1
      %p53 = por %p51, %p52
      %p54 = scmp.ne.s32.totalorder %s43, %s44
      %p55 = scmp.eq.s32.totalorder %s35, 0
      %p56 = por %p54, %p55
      %p57 = scmp.ne.s32.totalorder %s43, %s44
      %p58 = scmp.eq.s32.totalorder %s36, 1
      %p59 = por %p57, %p58
      %p61 = scmp.ne.s32.totalorder %s44, %s60
      %p62 = scmp.eq.s32.totalorder %s36, 0
      %p63 = por %p61, %p62
      %s64 = ssub.s32 %s30, %s37
      %p65 = scmp.eq.s32.totalorder %s64, 0
      %s67 = sadd.s32 %s66, 1
      %s68 = scalar_select %p65, %s66, %s67
      %p71 = pneg %p65
      %p72 = scmp.eq.s32.totalorder %s30, 1
      %p73 = por %p71, %p72
      %p74 = scmp.ne.s32.totalorder %s66, %s69
      %p75 = scmp.eq.s32.totalorder %s30, 0
      %p76 = por %p74, %p75
      %p77 = scmp.ne.s32.totalorder %s66, %s69
      %p78 = scmp.eq.s32.totalorder %s35, 1
      %p79 = por %p77, %p78
      %p80 = scmp.ne.s32.totalorder %s69, %s70
      %p81 = scmp.eq.s32.totalorder %s35, 0
      %p82 = por %p80, %p81
      %p83 = scmp.ne.s32.totalorder %s69, %s70
      %p84 = scmp.eq.s32.totalorder %s36, 1
      %p85 = por %p83, %p84
      %p87 = scmp.ne.s32.totalorder %s70, %s86
      %p88 = scmp.eq.s32.totalorder %s36, 0
      %p89 = por %p87, %p88
      %s91 = sadd.s32 %s90, 1
      %p94 = scmp.eq.s32.totalorder %s30, 1
      %p95 = scmp.ne.s32.totalorder %s90, %s92
      %p96 = scmp.eq.s32.totalorder %s30, 0
      %p97 = por %p95, %p96
      %p98 = scmp.ne.s32.totalorder %s90, %s92
      %p99 = scmp.eq.s32.totalorder %s35, 1
      %p100 = por %p98, %p99
      %p101 = scmp.ne.s32.totalorder %s92, %s93
      %p102 = scmp.eq.s32.totalorder %s35, 0
      %p103 = por %p101, %p102
      %p104 = scmp.ne.s32.totalorder %s92, %s93
      %p105 = scmp.eq.s32.totalorder %s36, 1
      %p106 = por %p104, %p105
      %p108 = scmp.ne.s32.totalorder %s93, %s107
      %p109 = scmp.eq.s32.totalorder %s36, 0
      %p110 = por %p108, %p109
      %s112 = sadd.s32 %s111, 1
      %p115 = scmp.eq.s32.totalorder %s30, 1
      %p116 = scmp.ne.s32.totalorder %s111, %s113
      %p117 = scmp.eq.s32.totalorder %s30, 0
      %p118 = por %p116, %p117
      %p119 = scmp.ne.s32.totalorder %s111, %s113
      %p120 = scmp.eq.s32.totalorder %s35, 1
      %p121 = por %p119, %p120
      %p122 = scmp.ne.s32.totalorder %s113, %s114
      %p123 = scmp.eq.s32.totalorder %s35, 0
      %p124 = por %p122, %p123
      %p125 = scmp.ne.s32.totalorder %s113, %s114
      %p126 = scmp.eq.s32.totalorder %s36, 1
      %p127 = por %p125, %p126
      %p129 = scmp.ne.s32.totalorder %s114, %s128
      %p130 = scmp.eq.s32.totalorder %s36, 0
      %p131 = por %p129, %p130
      %s133 = sadd.s32 %s132, 1
      %p136 = scmp.eq.s32.totalorder %s30, 1
      %p137 = scmp.ne.s32.totalorder %s132, %s134
      %p138 = scmp.eq.s32.totalorder %s30, 0
      %p139 = por %p137, %p138
      %p140 = scmp.ne.s32.totalorder %s132, %s134
      %p141 = scmp.eq.s32.totalorder %s35, 1
      %p142 = por %p140, %p141
      %p143 = scmp.ne.s32.totalorder %s134, %s135
      %p144 = scmp.eq.s32.totalorder %s35, 0
      %p145 = por %p143, %p144
      %p146 = scmp.ne.s32.totalorder %s134, %s135
      %p147 = scmp.eq.s32.totalorder %s36, 1
      %p148 = por %p146, %p147
      %p150 = scmp.ne.s32.totalorder %s135, %s149
      %p151 = scmp.eq.s32.totalorder %s36, 0
      %p152 = por %p150, %p151
      %s154 = sadd.s32 %s153, 1
      %p157 = scmp.eq.s32.totalorder %s30, 1
      %p158 = scmp.ne.s32.totalorder %s153, %s155
      %p159 = scmp.eq.s32.totalorder %s30, 0
      %p160 = por %p158, %p159
      %p161 = scmp.ne.s32.totalorder %s153, %s155
      %p162 = scmp.eq.s32.totalorder %s35, 1
      %p163 = por %p161, %p162
      %p164 = scmp.ne.s32.totalorder %s155, %s156
      %p165 = scmp.eq.s32.totalorder %s35, 0
      %p166 = por %p164, %p165
      %p167 = scmp.ne.s32.totalorder %s155, %s156
      %p168 = scmp.eq.s32.totalorder %s36, 1
      %p169 = por %p167, %p168
      %p171 = scmp.ne.s32.totalorder %s156, %s170
      %p172 = scmp.eq.s32.totalorder %s36, 0
      %p173 = por %p171, %p172
      %s175 = sadd.s32 %s174, 1
      %p178 = scmp.eq.s32.totalorder %s30, 1
      %p179 = scmp.ne.s32.totalorder %s174, %s176
      %p180 = scmp.eq.s32.totalorder %s30, 0
      %p181 = por %p179, %p180
      %p182 = scmp.ne.s32.totalorder %s174, %s176
      %p183 = scmp.eq.s32.totalorder %s35, 1
      %p184 = por %p182, %p183
      %p185 = scmp.ne.s32.totalorder %s176, %s177
      %p186 = scmp.eq.s32.totalorder %s35, 0
      %p187 = por %p185, %p186
      %p188 = scmp.ne.s32.totalorder %s176, %s177
      %p189 = scmp.eq.s32.totalorder %s36, 1
      %p190 = por %p188, %p189
      %p192 = scmp.ne.s32.totalorder %s177, %s191
      %p193 = scmp.eq.s32.totalorder %s36, 0
      %p194 = por %p192, %p193
      %s196 = sadd.s32 %s195, 1
      %p199 = scmp.eq.s32.totalorder %s30, 1
      %p200 = scmp.ne.s32.totalorder %s195, %s197
      %p201 = scmp.eq.s32.totalorder %s30, 0
      %p202 = por %p200, %p201
      %p203 = scmp.ne.s32.totalorder %s195, %s197
      %p204 = scmp.eq.s32.totalorder %s35, 1
      %p205 = por %p203, %p204
      %p206 = scmp.ne.s32.totalorder %s197, %s198
      %p207 = scmp.eq.s32.totalorder %s35, 0
      %p208 = por %p206, %p207
      %p209 = scmp.ne.s32.totalorder %s197, %s198
      %p210 = scmp.eq.s32.totalorder %s36, 1
      %p211 = por %p209, %p210
      %p213 = scmp.ne.s32.totalorder %s198, %s212
      %p214 = scmp.eq.s32.totalorder %s36, 0
      %p215 = por %p213, %p214
      %s217 = sadd.s32 %s216, 1
      %p220 = scmp.eq.s32.totalorder %s30, 1
      %p221 = scmp.ne.s32.totalorder %s216, %s218
      %p222 = scmp.eq.s32.totalorder %s30, 0
      %p223 = por %p221, %p222
      %p224 = scmp.ne.s32.totalorder %s216, %s218
      %p225 = scmp.eq.s32.totalorder %s35, 1
      %p226 = por %p224, %p225
      %p227 = scmp.ne.s32.totalorder %s218, %s219
      %p228 = scmp.eq.s32.totalorder %s35, 0
      %p229 = por %p227, %p228
      %p230 = scmp.ne.s32.totalorder %s218, %s219
      %p231 = scmp.eq.s32.totalorder %s36, 1
      %p232 = por %p230, %p231
      %p234 = scmp.ne.s32.totalorder %s219, %s233
      %p235 = scmp.eq.s32.totalorder %s36, 0
      %p236 = por %p234, %p235
      %s238 = sadd.s32 %s237, 1
      %p241 = scmp.eq.s32.totalorder %s30, 1
      %p242 = scmp.ne.s32.totalorder %s237, %s239
      %p243 = scmp.eq.s32.totalorder %s30, 0
      %p244 = por %p242, %p243
      %p245 = scmp.ne.s32.totalorder %s237, %s239
      %p246 = scmp.eq.s32.totalorder %s35, 1
      %p247 = por %p245, %p246
      %p248 = scmp.ne.s32.totalorder %s239, %s240
      %p249 = scmp.eq.s32.totalorder %s35, 0
      %p250 = por %p248, %p249
      %p251 = scmp.ne.s32.totalorder %s239, %s240
      %p252 = scmp.eq.s32.totalorder %s36, 1
      %p253 = por %p251, %p252
      %p255 = scmp.ne.s32.totalorder %s240, %s254
      %p256 = scmp.eq.s32.totalorder %s36, 0
      %p257 = por %p255, %p256
      %s259 = sadd.s32 %s258, 1
      %p262 = scmp.eq.s32.totalorder %s30, 1
      %p263 = scmp.ne.s32.totalorder %s258, %s260
      %p264 = scmp.eq.s32.totalorder %s30, 0
      %p265 = por %p263, %p264
      %p266 = scmp.ne.s32.totalorder %s258, %s260
      %p267 = scmp.eq.s32.totalorder %s35, 1
      %p268 = por %p266, %p267
      %p269 = scmp.ne.s32.totalorder %s260, %s261
      %p270 = scmp.eq.s32.totalorder %s35, 0
      %p271 = por %p269, %p270
      %p272 = scmp.ne.s32.totalorder %s260, %s261
      %p273 = scmp.eq.s32.totalorder %s36, 1
      %p274 = por %p272, %p273
      %p276 = scmp.ne.s32.totalorder %s261, %s275
      %p277 = scmp.eq.s32.totalorder %s36, 0
      %p278 = por %p276, %p277
      %s280 = sadd.s32 %s279, 1
      %p283 = scmp.eq.s32.totalorder %s30, 1
      %p284 = scmp.ne.s32.totalorder %s279, %s281
      %p285 = scmp.eq.s32.totalorder %s30, 0
      %p286 = por %p284, %p285
      %p287 = scmp.ne.s32.totalorder %s279, %s281
      %p288 = scmp.eq.s32.totalorder %s35, 1
      %p289 = por %p287, %p288
      %p290 = scmp.ne.s32.totalorder %s281, %s282
      %p291 = scmp.eq.s32.totalorder %s35, 0
      %p292 = por %p290, %p291
      %p293 = scmp.ne.s32.totalorder %s281, %s282
      %p294 = scmp.eq.s32.totalorder %s36, 1
      %p295 = por %p293, %p294
      %p297 = scmp.ne.s32.totalorder %s282, %s296
      %p298 = scmp.eq.s32.totalorder %s36, 0
      %p299 = por %p297, %p298
      %s301 = sadd.s32 %s300, 1
      %p304 = scmp.eq.s32.totalorder %s30, 1
      %p305 = scmp.ne.s32.totalorder %s300, %s302
      %p306 = scmp.eq.s32.totalorder %s30, 0
      %p307 = por %p305, %p306
      %p308 = scmp.ne.s32.totalorder %s300, %s302
      %p309 = scmp.eq.s32.totalorder %s35, 1
      %p310 = por %p308, %p309
      %p311 = scmp.ne.s32.totalorder %s302, %s303
      %p312 = scmp.eq.s32.totalorder %s35, 0
      %p313 = por %p311, %p312
      %p314 = scmp.ne.s32.totalorder %s302, %s303
      %p315 = scmp.eq.s32.totalorder %s36, 1
      %p316 = por %p314, %p315
      %p318 = scmp.ne.s32.totalorder %s303, %s317
      %p319 = scmp.eq.s32.totalorder %s36, 0
      %p320 = por %p318, %p319
      %s322 = sadd.s32 %s321, 1
      %p325 = scmp.eq.s32.totalorder %s30, 1
      %p326 = scmp.ne.s32.totalorder %s321, %s323
      %p327 = scmp.eq.s32.totalorder %s30, 0
      %p328 = por %p326, %p327
      %p329 = scmp.ne.s32.totalorder %s321, %s323
      %p330 = scmp.eq.s32.totalorder %s35, 1
      %p331 = por %p329, %p330
      %p332 = scmp.ne.s32.totalorder %s323, %s324
      %p333 = scmp.eq.s32.totalorder %s35, 0
      %p334 = por %p332, %p333
      %p335 = scmp.ne.s32.totalorder %s323, %s324
      %p336 = scmp.eq.s32.totalorder %s36, 1
      %p337 = por %p335, %p336
      %p339 = scmp.ne.s32.totalorder %s324, %s338
      %p340 = scmp.eq.s32.totalorder %s36, 0
      %p341 = por %p339, %p340
      %s343 = sadd.s32 %s342, 1
      %p346 = scmp.eq.s32.totalorder %s30, 1
      %p347 = scmp.ne.s32.totalorder %s342, %s344
      %p348 = scmp.eq.s32.totalorder %s30, 0
      %p349 = por %p347, %p348
      %p350 = scmp.ne.s32.totalorder %s342, %s344
      %p351 = scmp.eq.s32.totalorder %s35, 1
      %p352 = por %p350, %p351
      %p353 = scmp.ne.s32.totalorder %s344, %s345
      %p354 = scmp.eq.s32.totalorder %s35, 0
      %p355 = por %p353, %p354
      %p356 = scmp.ne.s32.totalorder %s344, %s345
      %p357 = scmp.eq.s32.totalorder %s36, 1
      %p358 = por %p356, %p357
      %p360 = scmp.ne.s32.totalorder %s345, %s359
      %p361 = scmp.eq.s32.totalorder %s36, 0
      %p362 = por %p360, %p361
      %s364 = sadd.s32 %s363, 1
      %p367 = scmp.eq.s32.totalorder %s30, 1
      %p368 = scmp.ne.s32.totalorder %s363, %s365
      %p369 = scmp.eq.s32.totalorder %s30, 0
      %p370 = por %p368, %p369
      %p371 = scmp.ne.s32.totalorder %s363, %s365
      %p372 = scmp.eq.s32.totalorder %s35, 1
      %p373 = por %p371, %p372
      %p374 = scmp.ne.s32.totalorder %s365, %s366
      %p375 = scmp.eq.s32.totalorder %s35, 0
      %p376 = por %p374, %p375
      %p377 = scmp.ne.s32.totalorder %s365, %s366
      %p378 = scmp.eq.s32.totalorder %s36, 1
      %p379 = por %p377, %p378
      %p381 = scmp.ne.s32.totalorder %s366, %s380
      %p382 = scmp.eq.s32.totalorder %s36, 0
      %p383 = por %p381, %p382
      %s385 = sadd.s32 %s384, 1
      %p388 = scmp.eq.s32.totalorder %s30, 1
      %p389 = scmp.ne.s32.totalorder %s384, %s386
      %p390 = scmp.eq.s32.totalorder %s30, 0
      %p391 = por %p389, %p390
      %p392 = scmp.ne.s32.totalorder %s384, %s386
      %p393 = scmp.eq.s32.totalorder %s35, 1
      %p394 = por %p392, %p393
      %p395 = scmp.ne.s32.totalorder %s386, %s387
      %p396 = scmp.eq.s32.totalorder %s35, 0
      %p397 = por %p395, %p396
      %p398 = scmp.ne.s32.totalorder %s386, %s387
      %p399 = scmp.eq.s32.totalorder %s36, 1
      %p400 = por %p398, %p399
      %p402 = scmp.ne.s32.totalorder %s387, %s401
      %p403 = scmp.eq.s32.totalorder %s36, 0
      %p404 = por %p402, %p403
      %s406 = sadd.s32 %s405, 1
      %p409 = scmp.eq.s32.totalorder %s30, 1
      %p410 = scmp.ne.s32.totalorder %s405, %s407
      %p411 = scmp.eq.s32.totalorder %s30, 0
      %p412 = por %p410, %p411
      %p413 = scmp.ne.s32.totalorder %s405, %s407
      %p414 = scmp.eq.s32.totalorder %s35, 1
      %p415 = por %p413, %p414
      %p416 = scmp.ne.s32.totalorder %s407, %s408
      %p417 = scmp.eq.s32.totalorder %s35, 0
      %p418 = por %p416, %p417
      %p419 = scmp.ne.s32.totalorder %s407, %s408
      %p420 = scmp.eq.s32.totalorder %s36, 1
      %p421 = por %p419, %p420
      %p423 = scmp.ne.s32.totalorder %s408, %s422
      %p424 = scmp.eq.s32.totalorder %s36, 0
      %p425 = por %p423, %p424
      %s426 = ssub.s32 %s30, %s37
      %p427 = scmp.eq.s32.totalorder %s426, 0
      %s429 = sadd.s32 %s428, 1
      %s430 = scalar_select %p427, %s428, %s429
      %p433 = pneg %p427
      %p434 = scmp.eq.s32.totalorder %s30, 1
      %p435 = por %p433, %p434
      %p436 = scmp.ne.s32.totalorder %s428, %s431
      %p437 = scmp.eq.s32.totalorder %s30, 0
      %p438 = por %p436, %p437
      %p439 = scmp.ne.s32.totalorder %s428, %s431
      %p440 = scmp.eq.s32.totalorder %s35, 1
      %p441 = por %p439, %p440
      %p442 = scmp.ne.s32.totalorder %s431, %s432
      %p443 = scmp.eq.s32.totalorder %s35, 0
      %p444 = por %p442, %p443
      %p445 = scmp.ne.s32.totalorder %s431, %s432
      %p446 = scmp.eq.s32.totalorder %s36, 1
      %p447 = por %p445, %p446
      %p449 = scmp.ne.s32.totalorder %s432, %s448
      %p450 = scmp.eq.s32.totalorder %s36, 0
      %p451 = por %p449, %p450
      %p452 = scmp.le.s32.totalorder 1, %s30
      %p453 = scmp.lt.s32.totalorder %s30, 3
      %p454 = pnand %p452, %p453
      %p455 = pneg %p454
      // Predicated region
      $region9: #{self_attn_forward.3} parent=5 // pred_check
        _
      $region10: #{self_attn_forward.3} parent=5 // pred_check_branch
        %457 = sbr.rel (%p454) target = $region12
      $region11: #{self_attn_forward.3} parent=5 // pred_region
        %s458 = ssub.s32 %s30, 1
        // Predicated region
        $region13: #{self_attn_forward.3} parent=11 // pred_check
          %p459 = pneg %p103
        $region14: #{self_attn_forward.3} parent=11 // pred_check_branch
          %461 = sbr.rel (%p459) target = $region16
        $region15: #{self_attn_forward.3} parent=11 // pred_region
          _
        $region16: #{self_attn_forward.3} parent=11 // pred_fallthru
          _
        // Predicated region
        $region17: #{self_attn_forward.3} parent=11 // pred_check
          %p462 = pneg %p124
        $region18: #{self_attn_forward.3} parent=11 // pred_check_branch
          %464 = sbr.rel (%p462) target = $region20
        $region19: #{self_attn_forward.3} parent=11 // pred_region
          _
        $region20: #{self_attn_forward.3} parent=11 // pred_fallthru
          _
        // Predicated region
        $region21: #{self_attn_forward.3} parent=11 // pred_check
          %p465 = pneg %p145
        $region22: #{self_attn_forward.3} parent=11 // pred_check_branch
          %467 = sbr.rel (%p465) target = $region24
        $region23: #{self_attn_forward.3} parent=11 // pred_region
          _
        $region24: #{self_attn_forward.3} parent=11 // pred_fallthru
          _
        // Predicated region
        $region25: #{self_attn_forward.3} parent=11 // pred_check
          %p468 = pneg %p166
        $region26: #{self_attn_forward.3} parent=11 // pred_check_branch
          %470 = sbr.rel (%p468) target = $region28
        $region27: #{self_attn_forward.3} parent=11 // pred_region
          _
        $region28: #{self_attn_forward.3} parent=11 // pred_fallthru
          _
        // Predicated region
        $region29: #{self_attn_forward.3} parent=11 // pred_check
          %p471 = pneg %p187
        $region30: #{self_attn_forward.3} parent=11 // pred_check_branch
          %473 = sbr.rel (%p471) target = $region32
        $region31: #{self_attn_forward.3} parent=11 // pred_region
          _
        $region32: #{self_attn_forward.3} parent=11 // pred_fallthru
          _
        // Predicated region
        $region33: #{self_attn_forward.3} parent=11 // pred_check
          %p474 = pneg %p208
        $region34: #{self_attn_forward.3} parent=11 // pred_check_branch
          %476 = sbr.rel (%p474) target = $region36
        $region35: #{self_attn_forward.3} parent=11 // pred_region
          _
        $region36: #{self_attn_forward.3} parent=11 // pred_fallthru
          _
        // Predicated region
        $region37: #{self_attn_forward.3} parent=11 // pred_check
          %p477 = pneg %p229
        $region38: #{self_attn_forward.3} parent=11 // pred_check_branch
          %479 = sbr.rel (%p477) target = $region40
        $region39: #{self_attn_forward.3} parent=11 // pred_region
          _
        $region40: #{self_attn_forward.3} parent=11 // pred_fallthru
          _
        // Predicated region
        $region41: #{self_attn_forward.3} parent=11 // pred_check
          %p480 = pneg %p250
        $region42: #{self_attn_forward.3} parent=11 // pred_check_branch
          %482 = sbr.rel (%p480) target = $region44
        $region43: #{self_attn_forward.3} parent=11 // pred_region
          _
        $region44: #{self_attn_forward.3} parent=11 // pred_fallthru
          _
        // Predicated region
        $region45: #{self_attn_forward.3} parent=11 // pred_check
          %p483 = pneg %p271
        $region46: #{self_attn_forward.3} parent=11 // pred_check_branch
          %485 = sbr.rel (%p483) target = $region48
        $region47: #{self_attn_forward.3} parent=11 // pred_region
          _
        $region48: #{self_attn_forward.3} parent=11 // pred_fallthru
          _
        // Predicated region
        $region49: #{self_attn_forward.3} parent=11 // pred_check
          %p486 = pneg %p292
        $region50: #{self_attn_forward.3} parent=11 // pred_check_branch
          %488 = sbr.rel (%p486) target = $region52
        $region51: #{self_attn_forward.3} parent=11 // pred_region
          _
        $region52: #{self_attn_forward.3} parent=11 // pred_fallthru
          _
        // Predicated region
        $region53: #{self_attn_forward.3} parent=11 // pred_check
          %p489 = pneg %p313
        $region54: #{self_attn_forward.3} parent=11 // pred_check_branch
          %491 = sbr.rel (%p489) target = $region56
        $region55: #{self_attn_forward.3} parent=11 // pred_region
          _
        $region56: #{self_attn_forward.3} parent=11 // pred_fallthru
          _
        // Predicated region
        $region57: #{self_attn_forward.3} parent=11 // pred_check
          %p492 = pneg %p334
        $region58: #{self_attn_forward.3} parent=11 // pred_check_branch
          %494 = sbr.rel (%p492) target = $region60
        $region59: #{self_attn_forward.3} parent=11 // pred_region
          _
        $region60: #{self_attn_forward.3} parent=11 // pred_fallthru
          _
        // Predicated region
        $region61: #{self_attn_forward.3} parent=11 // pred_check
          %p495 = pneg %p355
        $region62: #{self_attn_forward.3} parent=11 // pred_check_branch
          %497 = sbr.rel (%p495) target = $region64
        $region63: #{self_attn_forward.3} parent=11 // pred_region
          _
        $region64: #{self_attn_forward.3} parent=11 // pred_fallthru
          _
        // Predicated region
        $region65: #{self_attn_forward.3} parent=11 // pred_check
          %p498 = pneg %p376
        $region66: #{self_attn_forward.3} parent=11 // pred_check_branch
          %500 = sbr.rel (%p498) target = $region68
        $region67: #{self_attn_forward.3} parent=11 // pred_region
          _
        $region68: #{self_attn_forward.3} parent=11 // pred_fallthru
          _
        // Predicated region
        $region69: #{self_attn_forward.3} parent=11 // pred_check
          %p501 = pneg %p397
        $region70: #{self_attn_forward.3} parent=11 // pred_check_branch
          %503 = sbr.rel (%p501) target = $region72
        $region71: #{self_attn_forward.3} parent=11 // pred_region
          _
        $region72: #{self_attn_forward.3} parent=11 // pred_fallthru
          _
        // Predicated region
        $region73: #{self_attn_forward.3} parent=11 // pred_check
          %p504 = pneg %p418
        $region74: #{self_attn_forward.3} parent=11 // pred_check_branch
          %506 = sbr.rel (%p504) target = $region76
        $region75: #{self_attn_forward.3} parent=11 // pred_region
          _
        $region76: #{self_attn_forward.3} parent=11 // pred_fallthru
          _
      $region12: #{self_attn_forward.3} parent=5 // pred_fallthru
        _
      %p507 = scmp.lt.s32.totalorder %s30, 2
      // Predicated region
      $region77: #{self_attn_forward.3} parent=5 // pred_check
        %p508 = pneg %p507
      $region78: #{self_attn_forward.3} parent=5 // pred_check_branch
        %510 = sbr.rel (%p508) target = $region80
      $region79: #{self_attn_forward.3} parent=5 // pred_region
        // Predicated region
        $region81: #{self_attn_forward.3} parent=79 // pred_check
          %p511 = pneg %p50
        $region82: #{self_attn_forward.3} parent=79 // pred_check_branch
          %513 = sbr.rel (%p511) target = $region84
        $region83: #{self_attn_forward.3} parent=79 // pred_region
          %s514 = sand.u32 %s40, 1
          %s515 = scalar_lea.sflag [#allocation3], %s514
          %s516 = sand.u32 %s40, 1
          %s517 = smul.addr %s516, 8
          %s518 = scalar_lea.vmem [#allocation2], %s517
          %520 = vsyncadd %s515, 0
          %s521 = smul.addr %s30, 8
          %s522 = scalar_lea.hbm %s0, %s521
          %s524 = sshll.u32 %s522, 4
          %s525 = int_to_ptr.hbm [resolvable:$true] %s524
          %s526 = sshll.u32 %s518, 4
          %s527 = int_to_ptr.vmem [resolvable:$true] %s526
          %529 = dma.hbm_to_vmem [thread:$0]  %s525, 128, %s527, %s515
        $region84: #{self_attn_forward.3} parent=79 // pred_fallthru
          _
        // Predicated region
        $region85: #{self_attn_forward.3} parent=79 // pred_check
          %p530 = pneg %p76
        $region86: #{self_attn_forward.3} parent=79 // pred_check_branch
          %532 = sbr.rel (%p530) target = $region88
        $region87: #{self_attn_forward.3} parent=79 // pred_region
          %p533 = scmp.lt.s32.totalorder %s30, 1
          %s534 = scalar_select %p533, %s30, 1
          %s535 = smul.addr %s534, 8
          %s536 = scalar_lea.vmem %s1, %s535
        $region88: #{self_attn_forward.3} parent=79 // pred_fallthru
          _
      $region80: #{self_attn_forward.3} parent=5 // pred_fallthru
        _
      %p537 = scmp.le.s32.totalorder 1, %s30
      %p538 = scmp.lt.s32.totalorder %s30, 3
      %p539 = pnand %p537, %p538
      %p540 = pneg %p539
      // Predicated region
      $region89: #{self_attn_forward.3} parent=5 // pred_check
        _
      $region90: #{self_attn_forward.3} parent=5 // pred_check_branch
        %542 = sbr.rel (%p539) target = $region92
      $region91: #{self_attn_forward.3} parent=5 // pred_region
        %s543 = ssub.s32 %s30, 1
        %s544 = sand.u32 %s43, 1
        %s545 = scalar_lea.sflag [#allocation3], %s544
        %s546 = sand.u32 %s43, 1
        %s547 = smul.addr %s546, 8
        %s548 = scalar_lea.vmem [#allocation2], %s547
        // Predicated region
        $region93: #{self_attn_forward.3} parent=91 // pred_check
          %p549 = pneg %p56
        $region94: #{self_attn_forward.3} parent=91 // pred_check_branch
          %551 = sbr.rel (%p549) target = $region96
        $region95: #{self_attn_forward.3} parent=91 // pred_region
          %553 = dma.done %s545, 128
        $region96: #{self_attn_forward.3} parent=91 // pred_fallthru
          _
        %s554 = sand.u32 %s43, 1
        %s555 = scalar_lea.sflag [#allocation3], %s554
        %s556 = sand.u32 %s43, 1
        %s557 = smul.addr %s556, 8
        %s558 = scalar_lea.vmem [#allocation2], %s557
        %p559 = pneg %p56
        %p560 = pneg %p53
        %p561 = scmp.lt.s32.totalorder %s35, 1
        %s562 = scalar_select %p561, %s35, 1
        %s563 = smul.addr %s562, 8
        %s564 = scalar_lea.vmem %s1, %s563
        %p565 = pneg %p82
        %p566 = pneg %p79
        %p567 = pneg %p103
        %p568 = pneg %p100
        %p569 = pneg %p124
        %p570 = pneg %p121
        %p571 = pneg %p145
        %p572 = pneg %p142
        %p573 = pneg %p166
        %p574 = pneg %p163
        %p575 = pneg %p187
        %p576 = pneg %p184
        %p577 = pneg %p208
        %p578 = pneg %p205
        %p579 = pneg %p229
        %p580 = pneg %p226
        %p581 = pneg %p250
        %p582 = pneg %p247
        %p583 = pneg %p271
        %p584 = pneg %p268
        %p585 = pneg %p292
        %p586 = pneg %p289
        %p587 = pneg %p313
        %p588 = pneg %p310
        %p589 = pneg %p334
        %p590 = pneg %p331
        %p591 = pneg %p355
        %p592 = pneg %p352
        %p593 = pneg %p376
        %p594 = pneg %p373
        %p595 = pneg %p397
        %p596 = pneg %p394
        %p597 = pneg %p418
        %p598 = pneg %p415
        %p599 = pneg %p444
        %p600 = pneg %p441
        %s601 = sand.u32 %s431, 1
        %s602 = scalar_lea.sflag [#allocation4], %s601
        %s603 = sand.u32 %s431, 1
        %s604 = smul.addr %s603, 8
        %s605 = scalar_lea.vmem [#allocation5], %s604
        %p606 = scmp.lt.s32.totalorder %s35, 1
        %s607 = scalar_select %p606, %s35, 1
        %s608 = smul.addr %s607, 8
        %s609 = scalar_lea.vmem %s1, %s608
        %v610 = vld [vmem:[%s548] sm:$0xff]
        %v611 = vld [vmem:[%s6] sm:$0xff]
        %v612 = vld [vmem:[%s6 + $0x8] sm:$0xff]
        %v613 = vld [vmem:[%s6 + $0x10] sm:$0xff]
        %v614 = vld [vmem:[%s6 + $0x18] sm:$0xff]
        %v615 = vld [vmem:[%s7] sm:$0x1]
        %v617 = vperm.slane %v615, 0
        %vm619 = vcmask 261120
        %v621 = vsel %vm619, %v610, 0
        %623 = vmatpush.msra.mxu0 0.0
        %624 = vmatpush.msra.mxu0 0.0
        %625 = vmatpush.msra.mxu0 0.0
        %626 = vmatpush.msra.mxu0 0.0
        %627 = vmatpush.msra.mxu0 0.0
        %628 = vmatpush.msra.mxu0 0.0
        %629 = vmatpush.msra.mxu0 0.0
        %630 = vmatpush.msra.mxu0 0.0
        %631 = vmatpush.msra.mxu0 0.0
        %632 = vmatpush.msra.mxu0 0.0
        %633 = vmatpush.msra.mxu0 0.0
        %634 = vmatpush.msra.mxu0 0.0
        %635 = vmatpush.msra.mxu0 %v614
        %636 = vmatpush.msra.mxu0 %v613
        %637 = vmatpush.msra.mxu0 %v612
        %638 = vmatpush.msra.mxu0 %v611
        %639 = vmatmul.f32.gmra.mxu0 %v621
        %v640 = vpop.f32.mrf.mxu0
        %v641 = vadd.f32 %v617, %v640
        %642 = vdwg.mxu0
        %v643 = vld [vmem:[%s4] sm:$0xff]
        %v644 = vld [vmem:[%s4 + $0x8] sm:$0xff]
        %v645 = vld [vmem:[%s5] sm:$0xff]
        %v646 = vld [vmem:[%s5 + $0x8] sm:$0xff]
        %v647 = vld [vmem:[%s609] sm:$0xff]
        %v648 = vld [vmem:[%s2] sm:$0x1]
        %649 = vset.pattern.permute.xlu0 0
        %650 = vperm.xlu0 %649, %v647
        %v651 = vpop.permute.xlu0 %650
        %v652 = vperm.slane %v648, 0
        %vm653 = vcmp.eq.s32.totalorder %v651, %v652
        %v654 = vld [vmem:[%s3] sm:$0x1]
        %v656 = vperm.slane %v654, 0
        %v658 = vsel %vm653, %v656, -2e+09
        %v659 = vld [vmem:[%s8] sm:$0xff]
        %v660 = vld [vmem:[%s8 + $0x8] sm:$0xff]
        %v661 = vld [vmem:[%s8 + $0x10] sm:$0xff]
        %v662 = vld [vmem:[%s8 + $0x18] sm:$0xff]
        %vm663 = vcmask 130048
        %v665 = vsel %vm663, %v641, 0
        %v668 = vsel %vm663, %v643, 0
        %v671 = vsel %vm663, %v644, 0
        %673 = vmatpush.xpose.msra.mxu0 0.0
        %674 = vmatpush.xpose.msra.mxu0 0.0
        %675 = vmatpush.xpose.msra.mxu0 0.0
        %676 = vmatpush.xpose.msra.mxu0 0.0
        %677 = vmatpush.xpose.msra.mxu0 0.0
        %678 = vmatpush.xpose.msra.mxu0 0.0
        %679 = vmatpush.xpose.msra.mxu0 0.0
        %680 = vmatpush.xpose.msra.mxu0 0.0
        %681 = vmatpush.xpose.msra.mxu0 0.0
        %682 = vmatpush.xpose.msra.mxu0 0.0
        %683 = vmatpush.xpose.msra.mxu0 0.0
        %684 = vmatpush.xpose.msra.mxu0 0.0
        %685 = vmatpush.xpose.msra.mxu0 0.0
        %686 = vmatpush.xpose.msra.mxu0 0.0
        %687 = vmatpush.xpose.msra.mxu0 %v671
        %688 = vmatpush.xpose.msra.mxu0 %v668
        %689 = vmatmul.f32.gmra.mxu0 %v665
        %v690 = vpop.f32.mrf.mxu0
        %v691 = vadd.f32 %v658, %v690
        %692 = vdwg.mxu0
        %v693 = vsel %vm663, %v691, -inf
        %694 = vmax.xlane.f32.xlu0 %v693
        %v695 = vpop.xlane.xlu0 %694
        %v696 = vsub.f32 %v691, %v695
        %v697 = vmul.f32 %v696, 1.442695
        %v698 = vpow.pop %v697
        %v699 = vsel %vm663, %v698, 0.0
        %700 = vadd.xlane.f32.xlu0 %v699
        %v701 = vpop.xlane.xlu0 %700
        %v702 = vrcp.pop %v701
        %v703 = vmul.f32 %v701, %v702
        %v704 = vsub.f32 1.0, %v703
        %v705 = vmul.f32 %v702, %v704
        %v706 = vadd.f32 %v702, %v705
        %vm707 = vweird.f32 %v701
        %vm708 = vweird.f32 %v702
        %vm709 = vmor %vm707, %vm708
        %v710 = vsel %vm709, %v702, %v706
        %v711 = vand.u32 2147483647, %v701
        %vm712 = vcmp.eq.f32.partialorder %v711, 8.507059e+37
        %v713 = vand.u32 %v701, 2147483648
        %v714 = vor.u32 1.1754944e-38, %v713
        %v715 = vsel %vm712, %v714, %v710
        %v717 = vsel %vm663, %v698, 0
        %719 = vmatpush.msra.mxu0 0.0
        %720 = vmatpush.msra.mxu0 0.0
        %721 = vmatpush.msra.mxu0 0.0
        %722 = vmatpush.msra.mxu0 0.0
        %723 = vmatpush.msra.mxu0 0.0
        %724 = vmatpush.msra.mxu0 0.0
        %725 = vmatpush.msra.mxu0 0.0
        %726 = vmatpush.msra.mxu0 0.0
        %727 = vmatpush.msra.mxu0 0.0
        %728 = vmatpush.msra.mxu0 0.0
        %729 = vmatpush.msra.mxu0 0.0
        %730 = vmatpush.msra.mxu0 0.0
        %731 = vmatpush.msra.mxu0 0.0
        %732 = vmatpush.msra.mxu0 0.0
        %733 = vmatpush.msra.mxu0 %v646
        %734 = vmatpush.msra.mxu0 %v645
        %735 = vmatmul.f32.gmra.mxu0 %v717
        %v736 = vpop.f32.mrf.mxu0
        %v737 = vadd.f32 0.0, %v736
        %738 = vdwg.mxu0
        %v739 = vmul.f32 %v737, %v715
        %740 = vrot.lane.b32.xlu0 %v641, 112
        %v741 = vpop.permute.xlu0 %740
        %742 = vrot.lane.b32.xlu0 %v643, 112
        %v743 = vpop.permute.xlu0 %742
        %744 = vrot.lane.b32.xlu0 %v644, 112
        %v745 = vpop.permute.xlu0 %744
        %v746 = vsel %vm663, %v741, 0
        %v748 = vsel %vm663, %v743, 0
        %v750 = vsel %vm663, %v745, 0
        %752 = vmatpush.xpose.msra.mxu0 0.0
        %753 = vmatpush.xpose.msra.mxu0 0.0
        %754 = vmatpush.xpose.msra.mxu0 0.0
        %755 = vmatpush.xpose.msra.mxu0 0.0
        %756 = vmatpush.xpose.msra.mxu0 0.0
        %757 = vmatpush.xpose.msra.mxu0 0.0
        %758 = vmatpush.xpose.msra.mxu0 0.0
        %759 = vmatpush.xpose.msra.mxu0 0.0
        %760 = vmatpush.xpose.msra.mxu0 0.0
        %761 = vmatpush.xpose.msra.mxu0 0.0
        %762 = vmatpush.xpose.msra.mxu0 0.0
        %763 = vmatpush.xpose.msra.mxu0 0.0
        %764 = vmatpush.xpose.msra.mxu0 0.0
        %765 = vmatpush.xpose.msra.mxu0 0.0
        %766 = vmatpush.xpose.msra.mxu0 %v750
        %767 = vmatpush.xpose.msra.mxu0 %v748
        %768 = vmatmul.f32.gmra.mxu0 %v746
        %v769 = vpop.f32.mrf.mxu0
        %v770 = vadd.f32 %v658, %v769
        %771 = vdwg.mxu0
        %v772 = vsel %vm663, %v770, -inf
        %773 = vmax.xlane.f32.xlu0 %v772
        %v774 = vpop.xlane.xlu0 %773
        %v775 = vsub.f32 %v770, %v774
        %v776 = vmul.f32 %v775, 1.442695
        %v777 = vpow.pop %v776
        %v778 = vsel %vm663, %v777, 0.0
        %779 = vadd.xlane.f32.xlu0 %v778
        %v780 = vpop.xlane.xlu0 %779
        %v781 = vrcp.pop %v780
        %v782 = vmul.f32 %v780, %v781
        %v783 = vsub.f32 1.0, %v782
        %v784 = vmul.f32 %v781, %v783
        %v785 = vadd.f32 %v781, %v784
        %vm786 = vweird.f32 %v780
        %vm787 = vweird.f32 %v781
        %vm788 = vmor %vm786, %vm787
        %v789 = vsel %vm788, %v781, %v785
        %v790 = vand.u32 2147483647, %v780
        %vm791 = vcmp.eq.f32.partialorder %v790, 8.507059e+37
        %v792 = vand.u32 %v780, 2147483648
        %v793 = vor.u32 1.1754944e-38, %v792
        %v794 = vsel %vm791, %v793, %v789
        %797 = vrot.lane.b32.xlu0 %v645, 112
        %v798 = vpop.permute.xlu0 %797
        %799 = vrot.lane.b32.xlu0 %v646, 112
        %v800 = vpop.permute.xlu0 %799
        %v804 = vsel %vm663, %v777, 0
        %806 = vmatpush.msra.mxu0 0.0
        %807 = vmatpush.msra.mxu0 0.0
        %808 = vmatpush.msra.mxu0 0.0
        %809 = vmatpush.msra.mxu0 0.0
        %810 = vmatpush.msra.mxu0 0.0
        %811 = vmatpush.msra.mxu0 0.0
        %812 = vmatpush.msra.mxu0 0.0
        %813 = vmatpush.msra.mxu0 0.0
        %814 = vmatpush.msra.mxu0 0.0
        %815 = vmatpush.msra.mxu0 0.0
        %816 = vmatpush.msra.mxu0 0.0
        %817 = vmatpush.msra.mxu0 0.0
        %818 = vmatpush.msra.mxu0 0.0
        %819 = vmatpush.msra.mxu0 0.0
        %820 = vmatpush.msra.mxu0 %v800
        %821 = vmatpush.msra.mxu0 %v798
        %822 = vmatmul.f32.gmra.mxu0 %v804
        %v823 = vpop.f32.mrf.mxu0
        %v824 = vadd.f32 0.0, %v823
        %825 = vdwg.mxu0
        %v826 = vmul.f32 %v824, %v794
        %v828 = vsel %vm663, %v826, 0
        %830 = vmatpush.msra.mxu0 0.0
        %831 = vmatpush.msra.mxu0 0.0
        %832 = vmatpush.msra.mxu0 0.0
        %833 = vmatpush.msra.mxu0 0.0
        %834 = vmatpush.msra.mxu0 0.0
        %835 = vmatpush.msra.mxu0 0.0
        %836 = vmatpush.msra.mxu0 0.0
        %837 = vmatpush.msra.mxu0 0.0
        %838 = vmatpush.msra.mxu0 0.0
        %839 = vmatpush.msra.mxu0 0.0
        %840 = vmatpush.msra.mxu0 0.0
        %841 = vmatpush.msra.mxu0 0.0
        %842 = vmatpush.msra.mxu0 0.0
        %843 = vmatpush.msra.mxu0 0.0
        %844 = vmatpush.msra.mxu0 %v662
        %845 = vmatpush.msra.mxu0 %v661
        %846 = vmatmul.f32.gmra.mxu0 %v828
        %v847 = vpop.f32.mrf.mxu0
        %v848 = vadd.f32 0.0, %v847
        %849 = vdwg.mxu0
        %v851 = vsel %vm663, %v739, 0
        %853 = vmatpush.msra.mxu0 0.0
        %854 = vmatpush.msra.mxu0 0.0
        %855 = vmatpush.msra.mxu0 0.0
        %856 = vmatpush.msra.mxu0 0.0
        %857 = vmatpush.msra.mxu0 0.0
        %858 = vmatpush.msra.mxu0 0.0
        %859 = vmatpush.msra.mxu0 0.0
        %860 = vmatpush.msra.mxu0 0.0
        %861 = vmatpush.msra.mxu0 0.0
        %862 = vmatpush.msra.mxu0 0.0
        %863 = vmatpush.msra.mxu0 0.0
        %864 = vmatpush.msra.mxu0 0.0
        %865 = vmatpush.msra.mxu0 0.0
        %866 = vmatpush.msra.mxu0 0.0
        %867 = vmatpush.msra.mxu0 %v660
        %868 = vmatpush.msra.mxu0 %v659
        %869 = vmatmul.f32.gmra.mxu0 %v851
        %v870 = vpop.f32.mrf.mxu0
        %v871 = vadd.f32 %v848, %v870
        %872 = vdwg.mxu0
        %v873 = vld [vmem:[%s9] sm:$0x1]
        %v875 = vperm.slane %v873, 0
        %v877 = vadd.f32 %v871, %v875
        %v878 = vadd.f32 %v877, %v610
        %v879 = vld [vmem:[%s14] sm:$0x1]
        %v880 = vld [vmem:[%s15] sm:$0x1]
        %v881 = vsel %vm619, %v878, 0.0
        %882 = vadd.xlane.f32.xlu0 %v881
        %v883 = vpop.xlane.xlu0 %882
        %v884 = vrcp.pop 32.0
        %v885 = vmul.f32 32.0, %v884
        %v886 = vsub.f32 1.0, %v885
        %v887 = vmul.f32 %v884, %v886
        %v888 = vadd.f32 %v884, %v887
        %vm889 = vweird.f32 %v884
        %v890 = vsel %vm889, %v884, %v888
        %v891 = vmul.f32 %v883, %v890
        %v892 = vsub.f32 %v878, %v891
        %v893 = vmul.f32 %v892, %v892
        %v894 = vsel %vm619, %v893, 0.0
        %895 = vadd.xlane.f32.xlu0 %v894
        %v896 = vpop.xlane.xlu0 %895
        %v897 = vmul.f32 %v896, %v890
        %v898 = vadd.f32 %v897, 1e-05
        %v899 = vrsqrt.pop %v898
        %v900 = vmul.f32 %v899, %v898
        %v901 = vmul.f32 %v900, %v899
        %v902 = vmul.f32 0.5, %v901
        %v903 = vsub.f32 1.5, %v902
        %v904 = vmul.f32 %v899, %v903
        %vm905 = vweird.f32 %v898
        %vm906 = vweird.f32 %v899
        %vm907 = vmor %vm905, %vm906
        %v908 = vsel %vm907, %v899, %v904
        %v909 = vmul.f32 %v892, %v908
        %v911 = vperm.slane %v879, 0
        %v913 = vmul.f32 %v909, %v911
        %v915 = vperm.slane %v880, 0
        %v917 = vadd.f32 %v913, %v915
        %v918 = vld [vmem:[%s10] sm:$0xff]
        %v919 = vld [vmem:[%s10 + $0x8] sm:$0xff]
        %v920 = vld [vmem:[%s10 + $0x10] sm:$0xff]
        %v921 = vld [vmem:[%s10 + $0x18] sm:$0xff]
        %v922 = vld [vmem:[%s11] sm:$0x1]
        %v924 = vperm.slane %v922, 0
        %v927 = vsel %vm619, %v917, 0
        %929 = vmatpush.msra.mxu0 0.0
        %930 = vmatpush.msra.mxu0 0.0
        %931 = vmatpush.msra.mxu0 0.0
        %932 = vmatpush.msra.mxu0 0.0
        %933 = vmatpush.msra.mxu0 0.0
        %934 = vmatpush.msra.mxu0 0.0
        %935 = vmatpush.msra.mxu0 0.0
        %936 = vmatpush.msra.mxu0 0.0
        %937 = vmatpush.msra.mxu0 0.0
        %938 = vmatpush.msra.mxu0 0.0
        %939 = vmatpush.msra.mxu0 0.0
        %940 = vmatpush.msra.mxu0 0.0
        %941 = vmatpush.msra.mxu0 %v921
        %942 = vmatpush.msra.mxu0 %v920
        %943 = vmatpush.msra.mxu0 %v919
        %944 = vmatpush.msra.mxu0 %v918
        %945 = vmatmul.f32.gmra.mxu0 %v927
        %v946 = vpop.f32.mrf.mxu0
        %v947 = vadd.f32 %v924, %v946
        %948 = vdwg.mxu0
        %v949 = vmax.f32 %v947, 0.0
        %v950 = vld [vmem:[%s12] sm:$0xff]
        %v951 = vld [vmem:[%s12 + $0x8] sm:$0xff]
        %v952 = vld [vmem:[%s12 + $0x10] sm:$0xff]
        %v953 = vld [vmem:[%s12 + $0x18] sm:$0xff]
        %v954 = vld [vmem:[%s12 + $0x20] sm:$0xff]
        %v955 = vld [vmem:[%s12 + $0x28] sm:$0xff]
        %v956 = vld [vmem:[%s12 + $0x30] sm:$0xff]
        %v957 = vld [vmem:[%s12 + $0x38] sm:$0xff]
        %v958 = vld [vmem:[%s13] sm:$0x1]
        %v960 = vperm.slane %v958, 0
        %vm962 = vcmask 523264
        %v964 = vsel %vm962, %v949, 0
        %966 = vmatpush.msra.mxu0 0.0
        %967 = vmatpush.msra.mxu0 0.0
        %968 = vmatpush.msra.mxu0 0.0
        %969 = vmatpush.msra.mxu0 0.0
        %970 = vmatpush.msra.mxu0 0.0
        %971 = vmatpush.msra.mxu0 0.0
        %972 = vmatpush.msra.mxu0 0.0
        %973 = vmatpush.msra.mxu0 0.0
        %974 = vmatpush.msra.mxu0 %v957
        %975 = vmatpush.msra.mxu0 %v956
        %976 = vmatpush.msra.mxu0 %v955
        %977 = vmatpush.msra.mxu0 %v954
        %978 = vmatpush.msra.mxu0 %v953
        %979 = vmatpush.msra.mxu0 %v952
        %980 = vmatpush.msra.mxu0 %v951
        %981 = vmatpush.msra.mxu0 %v950
        %982 = vmatmul.f32.gmra.mxu0 %v964
        %v983 = vpop.f32.mrf.mxu0
        %v984 = vadd.f32 %v960, %v983
        %985 = vdwg.mxu0
        %v986 = vadd.f32 %v917, %v984
        %v987 = vld [vmem:[%s16] sm:$0x1]
        %v988 = vld [vmem:[%s17] sm:$0x1]
        %v989 = vsel %vm619, %v986, 0.0
        %990 = vadd.xlane.f32.xlu0 %v989
        %v991 = vpop.xlane.xlu0 %990
        %v992 = vmul.f32 %v991, %v890
        %v993 = vsub.f32 %v986, %v992
        %v994 = vmul.f32 %v993, %v993
        %v995 = vsel %vm619, %v994, 0.0
        %996 = vadd.xlane.f32.xlu0 %v995
        %v997 = vpop.xlane.xlu0 %996
        %v998 = vmul.f32 %v997, %v890
        %v999 = vadd.f32 %v998, 1e-05
        %v1000 = vrsqrt.pop %v999
        %v1001 = vmul.f32 %v1000, %v999
        %v1002 = vmul.f32 %v1001, %v1000
        %v1003 = vmul.f32 0.5, %v1002
        %v1004 = vsub.f32 1.5, %v1003
        %v1005 = vmul.f32 %v1000, %v1004
        %vm1006 = vweird.f32 %v999
        %vm1007 = vweird.f32 %v1000
        %vm1008 = vmor %vm1006, %vm1007
        %v1009 = vsel %vm1008, %v1000, %v1005
        %v1010 = vmul.f32 %v993, %v1009
        %v1012 = vperm.slane %v987, 0
        %v1014 = vmul.f32 %v1010, %v1012
        %v1016 = vperm.slane %v988, 0
        %v1018 = vadd.f32 %v1014, %v1016
        %1019 = vst.msk [vmem:[%s605] sm:$0xff] %vm619, %v1018
        %s1020 = sand.u32 %s431, 1
        %s1021 = scalar_lea.sflag [#allocation4], %s1020
        %s1022 = sand.u32 %s431, 1
        %s1023 = smul.addr %s1022, 8
        %s1024 = scalar_lea.vmem [#allocation5], %s1023
        // Predicated region
        $region97: #{self_attn_forward.3} parent=91 // pred_check
          %p1025 = pneg %p441
        $region98: #{self_attn_forward.3} parent=91 // pred_check_branch
          %1027 = sbr.rel (%p1025) target = $region100
        $region99: #{self_attn_forward.3} parent=91 // pred_region
          %1029 = vsyncadd %s1021, 0
          %s1030 = smul.addr %s35, 8
          %s1031 = scalar_lea.hbm %s18, %s1030
          %s1033 = sshll.u32 %s1024, 4
          %s1034 = int_to_ptr.vmem [resolvable:$true] %s1033
          %s1035 = sshll.u32 %s1031, 4
          %s1036 = int_to_ptr.hbm [resolvable:$true] %s1035
          %1038 = dma.vmem_to_hbm [thread:$0]  %s1034, 128, %s1036, %s1021
        $region100: #{self_attn_forward.3} parent=91 // pred_fallthru
          _
      $region92: #{self_attn_forward.3} parent=5 // pred_fallthru
        _
      %p1039 = scmp.le.s32.totalorder 2, %s30
      // Predicated region
      $region101: #{self_attn_forward.3} parent=5 // pred_check
        %p1040 = pneg %p1039
      $region102: #{self_attn_forward.3} parent=5 // pred_check_branch
        %1042 = sbr.rel (%p1040) target = $region104
      $region103: #{self_attn_forward.3} parent=5 // pred_region
        %s1043 = ssub.s32 %s30, 2
        // Predicated region
        $region105: #{self_attn_forward.3} parent=103 // pred_check
          %p1044 = pneg %p447
        $region106: #{self_attn_forward.3} parent=103 // pred_check_branch
          %1046 = sbr.rel (%p1044) target = $region108
        $region107: #{self_attn_forward.3} parent=103 // pred_region
          %s1047 = sand.u32 %s432, 1
          %s1048 = scalar_lea.sflag [#allocation4], %s1047
          %s1049 = sand.u32 %s432, 1
          %s1050 = smul.addr %s1049, 8
          %s1051 = scalar_lea.vmem [#allocation5], %s1050
          %1053 = dma.done %s1048, 128
        $region108: #{self_attn_forward.3} parent=103 // pred_fallthru
          _
      $region104: #{self_attn_forward.3} parent=5 // pred_fallthru
        _
    $region6: #{self_attn_forward.3} parent=1 // loop_footer
      %s34 = sadd.s32 1, %s30
    $region7: #{self_attn_forward.3} parent=1 // loop_footer_branch
      %29 = sbr.rel target = $region3
    $region8: #{self_attn_forward.3} parent=1 // loop_exit
      _
    %1054 = vsyncpa [#allocation3], 1
    %s1055 = scalar_lea.sflag [#allocation3], 1
    %1056 = vsyncpa %s1055, 1
    %1057 = vsyncpa [#allocation4], 1
    %s1058 = scalar_lea.sflag [#allocation4], 1
    %1059 = vsyncpa %s1058, 1

</llo_original>
